<compile_context>
chip_gen: v7x
topology: tpu7x:2x2x1
jax: 0.10.0
libtpu: 0.0.40
codegen_flags: <defaults>
</compile_context>

<pallas_src>
import functools

import numpy as np
import jax
import jax.numpy as jnp
from jax.experimental import pallas as pl
from jax.experimental.pallas import tpu as pltpu

# Synthetic MNIST-style CNN geometry (same as the reference example):
#   conv1: 1->C1, 5x5 valid (16x16 -> 12x12); maxpool 2x2 (-> 6x6); relu
#   conv2: C1->C2, 5x5 valid (6x6 -> 2x2);    maxpool 2x2 (-> 1x1); relu
#   flatten; fc1 C2->F1; relu; fc2 F1->NCLS
KSZ = 5
N_TAP2 = KSZ * KSZ               # conv2 spatial taps (i2, j2) = 25
N_POOL1 = 4                      # 2x2 max-pool-1 candidates g1 = (dy, dx)
N_POS2 = 4                       # conv2 output positions g2 = (y', x') per sample
N_PATCH_LANES = N_TAP2 * KSZ * KSZ   # 625 lanes: (t2, k1)
ROWS_PER_SAMPLE = N_POOL1 * N_POS2   # 16 rows per sample: (g1, g2)


def _pick_block_batch(n_batch):
    """Samples per grid step.  8 keeps the pool-2 row blocks sublane-aligned (v5e
    feedback); fall back to smaller divisors for small / odd batches."""
    for cand in (8, 4, 2, 1):
        if n_batch % cand == 0:
            return cand
    return n_batch


# ----------------------------------------------------------------------------
# Static conv1 im2col indices (pool-1 / conv-2 / batch-block friendly layout)
# ----------------------------------------------------------------------------
@functools.lru_cache(maxsize=None)
def _conv1_patch_indices(n_batch, nb):
    """Gather indices producing the (16*n_batch, 625) conv1 im2col layout.

    Row order  : (batch_block, g1=(dy,dx), g2=(y',x'), n_local)
    Lane order : (t2=(i2,j2), k1=(i1,j1))

    With this layout:
      * pool-1 candidates (g1) are 4 aligned, contiguous row blocks,
      * the block-diagonal conv1 RHS makes the conv1 output lanes (t2, c1), so the
        pooled activations are directly the conv2 LHS (K = 25*C1) with no reshape,
      * pool-2 candidates (g2) are 4 contiguous row blocks of nb rows,
      * each batch block of nb samples is one contiguous row slab (BlockSpec-able).
    """
    assert n_batch % nb == 0
    rows = []
    for blk in range(n_batch // nb):
        for dy in range(2):
            for dx in range(2):
                for yp in range(2):
                    for xp in range(2):
                        for n in range(nb):
                            rows.append((blk * nb + n, dy, dx, yp, xp))
    rows = np.asarray(rows, dtype=np.int32)                       # (16*n_batch, 5)
    i2, j2, i1, j1 = np.meshgrid(np.arange(KSZ), np.arange(KSZ),
                                 np.arange(KSZ), np.arange(KSZ), indexing="ij")
    i2 = i2.reshape(-1).astype(np.int32)
    j2 = j2.reshape(-1).astype(np.int32)
    i1 = i1.reshape(-1).astype(np.int32)
    j1 = j1.reshape(-1).astype(np.int32)
    n_idx = np.broadcast_to(rows[:, 0:1], (rows.shape[0], N_PATCH_LANES))
    y_idx = 2 * (rows[:, 3:4] + i2[None, :]) + rows[:, 1:2] + i1[None, :]
    x_idx = 2 * (rows[:, 4:5] + j2[None, :]) + rows[:, 2:3] + j1[None, :]
    return n_idx, y_idx, x_idx


# ----------------------------------------------------------------------------
# In-kernel CD building blocks (pure jnp on values, traced into the fused kernel)
# ----------------------------------------------------------------------------
def _bias_split(rel, irrel, bias):
    """CDEP propagate_conv_linear proportional bias split.  Exact division
    (correctness feedback: approx reciprocal error compounded over 4 layers);
    the eps stabilizer matches the original CDEP code."""
    prop_rel = jnp.abs(rel) + 1e-20
    prop_irrel = jnp.abs(irrel) + 1e-20
    inv = 1.0 / (prop_rel + prop_irrel)
    return rel + (prop_rel * inv) * bias, irrel + (prop_irrel * inv) * bias


def _relu_cd(rel, irrel):
    """CDEP propagate_relu."""
    rel_act = jnp.maximum(rel, 0.0)
    return rel_act, jnp.maximum(rel + irrel, 0.0) - rel_act


def _maxpool_cd(rel, irrel, n_blocks, block_rows):
    """CDEP propagate_pooling: candidates are `n_blocks` contiguous row blocks of
    `block_rows` rows; select rel AND irrel at argmax(rel+irrel) with first-max
    tie breaking (== MaxPool indices of the summed activation)."""
    best_rel = rel[:block_rows]
    best_irrel = irrel[:block_rows]
    best_both = best_rel + best_irrel
    for g in range(1, n_blocks):
        cand_rel = rel[g * block_rows:(g + 1) * block_rows]
        cand_irrel = irrel[g * block_rows:(g + 1) * block_rows]
        cand_both = cand_rel + cand_irrel
        take = cand_both > best_both
        best_both = jnp.where(take, cand_both, best_both)
        best_rel = jnp.where(take, cand_rel, best_rel)
        best_irrel = jnp.where(take, cand_irrel, best_irrel)
    return best_rel, best_irrel


# ----------------------------------------------------------------------------
# The fused kernel: full CD propagation + per-block partial RR sum
# ----------------------------------------------------------------------------
def _cdep_fused_kernel(xp_ref, ep_ref, w1_ref, b1_ref, w2_ref, b2_ref,
                       wf1_ref, bf1_ref, wf2_ref, bf2_ref, out_ref):
    nb = xp_ref.shape[0] // ROWS_PER_SAMPLE       # samples in this batch block

    # ---- mask split in patch space (bf16; mask is 0/1 so the product is exact) ----
    xp = xp_ref[...]                              # (16*nb, 625) bf16
    rel_p = ep_ref[...] * xp                      # relevant = E_pnlt * X

    # ---- conv1: block-diagonal RHS -> output lanes (t2, c1) = 200.  Two bf16 MXU
    #      dots (RHS stays resident); irrel recovered by linearity (no concat, no
    #      patch-wide irrel materialization). ----
    w1 = w1_ref[...]
    z_rel = jnp.dot(rel_p, w1, preferred_element_type=jnp.float32)
    z_tot = jnp.dot(xp, w1, preferred_element_type=jnp.float32)
    rel, irrel = _bias_split(z_rel, z_tot - z_rel, b1_ref[...])   # b1 tiled to 200

    # ---- CD max-pool #1 (4 aligned row blocks of 4*nb rows) + CD ReLU #1 ----
    rel, irrel = _maxpool_cd(rel, irrel, N_POOL1, N_POS2 * nb)
    rel, irrel = _relu_cd(rel, irrel)             # (4*nb, 200), rows (g2, n)

    # ---- conv2: ONE K=200 MXU dot per half (no tap loop / concats / add chain) ----
    w2 = w2_ref[...]
    rel = jnp.dot(rel, w2, preferred_element_type=jnp.float32)
    irrel = jnp.dot(irrel, w2, preferred_element_type=jnp.float32)
    rel, irrel = _bias_split(rel, irrel, b2_ref[...])

    # ---- CD max-pool #2 (4 row blocks of nb rows) + CD ReLU #2 ----
    # TODO(synk): for batch blocks where nb % 8 != 0 these row slices are not
    # sublane-aligned (tiny relayouts); folding g2 into lanes would remove them.
    rel, irrel = _maxpool_cd(rel, irrel, N_POS2, nb)
    rel, irrel = _relu_cd(rel, irrel)             # (nb, C2) == flattened features

    # ---- fc1 (+ bias split + CD ReLU) ----
    rel = jnp.dot(rel, wf1_ref[...], preferred_element_type=jnp.float32)
    irrel = jnp.dot(irrel, wf1_ref[...], preferred_element_type=jnp.float32)
    rel, irrel = _bias_split(rel, irrel, bf1_ref[...])
    rel, irrel = _relu_cd(rel, irrel)

    # ---- fc2 (+ bias split) ----
    rel = jnp.dot(rel, wf2_ref[...], preferred_element_type=jnp.float32)
    irrel = jnp.dot(irrel, wf2_ref[...], preferred_element_type=jnp.float32)
    rel, irrel = _bias_split(rel, irrel, bf2_ref[...])

    # ---- softmax(stack([rel, irrel]), 1)[:, 0] == sigmoid(rel - irrel) (EUP tanh);
    #      per-block partial sum; mean / scale / clip epilogue is scalar glue
    #      outside the kernel ----
    prob = 0.5 * (jnp.tanh(0.5 * (rel - irrel)) + 1.0)
    out_ref[0] = jnp.sum(prob, axis=(0, 1), keepdims=True)


# ----------------------------------------------------------------------------
# Wrapper: operand staging (one static gather + weight re-layout) + pallas_call
# ----------------------------------------------------------------------------
def cdep_rr_loss(params, X, E_pnlt, *, normalization_rate, regularization_rate,
                 rr_clipping=None):
    X = X.astype(jnp.float32)
    E_pnlt = E_pnlt.astype(jnp.float32)
    n_batch = X.shape[0]
    nb = _pick_block_batch(n_batch)
    num_blocks = n_batch // nb
    rows_blk = ROWS_PER_SAMPLE * nb

    # Single static gather: conv1 im2col in the pool/conv2-friendly, lane-dense
    # layout; staged in bf16 (halves HBM bytes of the two dominant operands; the
    # 0/1 mask is exact in bf16).
    n_idx, y_idx, x_idx = _conv1_patch_indices(n_batch, nb)
    x_patches = X[n_idx, 0, y_idx, x_idx].astype(jnp.bfloat16)        # (16N, 625)
    e_patches = E_pnlt[n_idx, 0, y_idx, x_idx].astype(jnp.bfloat16)   # (16N, 625)

    c1 = params['conv1_w'].shape[0]
    c2 = params['conv2_w'].shape[0]
    f1 = params['fc1_w'].shape[0]
    n_cls = params['fc2_w'].shape[0]

    # conv1 weight as block-diagonal (625, 200) = kron(I_25, W1): the conv2-tap axis
    # lands directly in the conv1-output lanes -> no in-kernel relayout needed.
    w1m = params['conv1_w'].reshape(c1, N_TAP2).T.astype(jnp.float32)      # (25, C1)
    w1bd = jnp.kron(jnp.eye(N_TAP2, dtype=jnp.float32), w1m).astype(jnp.bfloat16)
    b1t = jnp.tile(params['conv1_b'].reshape(1, c1).astype(jnp.float32),
                   (1, N_TAP2))                                            # (1, 200)
    # conv2 weights as (25*C1, C2): tap-major, input-channel-minor (matches lanes).
    w2m = jnp.transpose(params['conv2_w'], (2, 3, 1, 0)).reshape(
        N_TAP2 * c1, c2).astype(jnp.float32)
    b2 = params['conv2_b'].reshape(1, c2).astype(jnp.float32)
    wf1 = params['fc1_w'].T.astype(jnp.float32)                            # (C2, F1)
    bf1 = params['fc1_b'].reshape(1, f1).astype(jnp.float32)
    wf2 = params['fc2_w'].T.astype(jnp.float32)                            # (F1, NCLS)
    bf2 = params['fc2_b'].reshape(1, n_cls).astype(jnp.float32)

    def _full(op):
        return pl.BlockSpec(op.shape, lambda b: (0, 0))                    # resident

    weights = (w1bd, b1t, w2m, b2, wf1, bf1, wf2, bf2)
    in_specs = (
        [pl.BlockSpec((rows_blk, N_PATCH_LANES), lambda b: (b, 0)),
         pl.BlockSpec((rows_blk, N_PATCH_LANES), lambda b: (b, 0))]
        + [_full(w) for w in weights])

    flops = 2 * num_blocks * (
        2 * rows_blk * N_PATCH_LANES * (N_TAP2 * c1)       # conv1 (rel + total)
        + 2 * N_POS2 * nb * (N_TAP2 * c1) * c2             # conv2 (rel + irrel)
        + 2 * nb * c2 * f1 + 2 * nb * f1 * n_cls)          # fc1 + fc2
    bytes_accessed = int(
        sum(int(np.prod(a.shape)) * a.dtype.itemsize
            for a in (x_patches, e_patches) + weights) + num_blocks * 4)

    partials = pl.pallas_call(
        _cdep_fused_kernel,
        grid=(num_blocks,),
        in_specs=in_specs,
        out_specs=pl.BlockSpec((1, 1, 1), lambda b: (b, 0, 0)),
        out_shape=jax.ShapeDtypeStruct((num_blocks, 1, 1), jnp.float32),
        compiler_params=pltpu.CompilerParams(
            dimension_semantics=("parallel",),     # shards blocks over v7x's 2 TCs
            vmem_limit_bytes=32 * 1024 * 1024),
        cost_estimate=pl.CostEstimate(
            flops=int(flops),
            transcendentals=int(n_batch * n_cls),
            bytes_accessed=bytes_accessed),
    )(x_patches, e_patches, *weights)

    # Scalar epilogue (mean / normalization / regularization / clipping) on the
    # per-block partials; matches the reference order: clip AFTER scaling.
    loss = jnp.sum(partials) * (float(normalization_rate) *
                                float(regularization_rate) /
                                float(n_batch * n_cls))
    if rr_clipping is not None:
        loss = jnp.minimum(loss, jnp.float32(rr_clipping))
    return loss


class CDEPLossPallas:
    """CDEP right-reason loss; the CD propagation through the MNIST-style CNN plus
    the softmax-stack reduction are fused into a single Pallas TPU kernel."""

    def __init__(self, normalization_rate, regularization_rate,
                 model_type='mnist', rr_clipping=None):
        self.normalization_rate = normalization_rate
        self.regularization_rate = regularization_rate
        self.model_type = model_type
        self.rr_clipping = rr_clipping

    def __call__(self, params, X, y, ra_loss, E_pnlt, E_rwrd, logits):
        # y / ra_loss / E_rwrd / logits are unused by the right-reason term, exactly
        # as in the reference forward; kept for signature fidelity.
        return cdep_rr_loss(params, X, E_pnlt,
                            normalization_rate=self.normalization_rate,
                            regularization_rate=self.regularization_rate,
                            rr_clipping=self.rr_clipping)


# ----------------------------------------------------------------------------
# Pure-JAX reference (independent formulation: lax.conv + window argmax pooling)
# ----------------------------------------------------------------------------
def _ref_bias_split(rel, irrel, bias):
    prop_rel = jnp.abs(rel) + 1e-20
    prop_irrel = jnp.abs(irrel) + 1e-20
    prop_sum = prop_rel + prop_irrel
    return rel + prop_rel / prop_sum * bias, irrel + prop_irrel / prop_sum * bias


def _ref_conv(rel, irrel, w, b):
    dn = ('NCHW', 'OIHW', 'NCHW')
    conv = lambda x: jax.lax.conv_general_dilated(
        x, w, (1, 1), 'VALID', dimension_numbers=dn, precision='highest')
    return _ref_bias_split(conv(rel), conv(irrel), b.reshape(1, -1, 1, 1))


def _ref_maxpool(rel, irrel):
    n, c, h, w = rel.shape
    def win(x):
        return x.reshape(n, c, h // 2, 2, w // 2, 2).transpose(
            0, 1, 2, 4, 3, 5).reshape(n, c, h // 2, w // 2, 4)
    idx = jnp.argmax(win(rel + irrel), axis=-1)[..., None]
    take = lambda x: jnp.take_along_axis(win(x), idx, axis=-1)[..., 0]
    return take(rel), take(irrel)


def _ref_relu(rel, irrel):
    r = jnp.maximum(rel, 0.0)
    return r, jnp.maximum(rel + irrel, 0.0) - r


def cdep_rr_loss_reference(params, X, E_pnlt, normalization_rate,
                           regularization_rate, rr_clipping=None):
    rel, irrel = E_pnlt * X, (1.0 - E_pnlt) * X
    rel, irrel = _ref_conv(rel, irrel, params['conv1_w'], params['conv1_b'])
    rel, irrel = _ref_maxpool(rel, irrel)
    rel, irrel = _ref_relu(rel, irrel)
    rel, irrel = _ref_conv(rel, irrel, params['conv2_w'], params['conv2_b'])
    rel, irrel = _ref_maxpool(rel, irrel)
    rel, irrel = _ref_relu(rel, irrel)
    n = rel.shape[0]
    rel, irrel = rel.reshape(n, -1), irrel.reshape(n, -1)
    fc = lambda x, w: jnp.dot(x, w.T, precision='highest')
    rel, irrel = _ref_bias_split(fc(rel, params['fc1_w']), fc(irrel, params['fc1_w']),
                                 params['fc1_b'][None, :])
    rel, irrel = _ref_relu(rel, irrel)
    rel, irrel = _ref_bias_split(fc(rel, params['fc2_w']), fc(irrel, params['fc2_w']),
                                 params['fc2_b'][None, :])
    prob = jax.nn.sigmoid(rel - irrel)   # == softmax(stack([rel, irrel]), 1)[:, 0]
    loss = prob.mean() * normalization_rate * regularization_rate
    if rr_clipping is not None:
        loss = jnp.minimum(loss, rr_clipping)
    return loss


# ----------------------------------------------------------------------------
# Example run
# ----------------------------------------------------------------------------
if __name__ == "__main__":
    key = jax.random.PRNGKey(0)
    ks = jax.random.split(key, 12)

    # Synthetic MNIST-style model parameters (deterministic, small shapes)
    params = {
        'conv1_w': jax.random.normal(ks[0], (8, 1, 5, 5), jnp.float32) * 0.2,
        'conv1_b': jax.random.normal(ks[1], (8,), jnp.float32) * 0.1,
        'conv2_w': jax.random.normal(ks[2], (16, 8, 5, 5), jnp.float32) * 0.1,
        'conv2_b': jax.random.normal(ks[3], (16,), jnp.float32) * 0.1,
        'fc1_w': jax.random.normal(ks[4], (32, 16), jnp.float32) * 0.2,
        'fc1_b': jax.random.normal(ks[5], (32,), jnp.float32) * 0.1,
        'fc2_w': jax.random.normal(ks[6], (10, 32), jnp.float32) * 0.2,
        'fc2_b': jax.random.normal(ks[7], (10,), jnp.float32) * 0.1,
    }

    # Inputs (NCHW)
    X = jax.random.normal(ks[8], (2, 1, 16, 16), jnp.float32)
    E_pnlt = (jax.random.uniform(ks[9], (2, 1, 16, 16)) > 0.5).astype(jnp.float32)
    E_rwrd = 1.0 - E_pnlt
    y = jnp.array([0, 1], jnp.int32)
    logits = jax.random.normal(ks[10], (2, 10), jnp.float32)
    ra_loss = jnp.float32(0.7)  # unused by the RR forward, kept for signature fidelity

    loss_fn = CDEPLossPallas(normalization_rate=1.0,
                             regularization_rate=10.0,
                             model_type='mnist',
                             rr_clipping=None)

    fwd = jax.jit(lambda p, x, e: loss_fn(p, x, y, ra_loss, e, E_rwrd, logits))
    rr = jax.block_until_ready(fwd(params, X, E_pnlt))

    rr_ref = cdep_rr_loss_reference(params, X, E_pnlt, 1.0, 10.0, None)
    assert rr.shape == () and bool(jnp.isfinite(rr))
    assert bool(jnp.allclose(rr, rr_ref, rtol=5e-2, atol=5e-2)), (float(rr), float(rr_ref))
    print("KERNEL_OK")
</pallas_src>

<mosaic_0001>
module attributes {stable_mosaic.version = 11 : i64} {
  func.func @_cdep_fused_kernel(%arg0: i32, %arg1: memref<32x625xbf16, #tpu.memory_space<vmem>>, %arg2: memref<32x625xbf16, #tpu.memory_space<vmem>>, %arg3: memref<625x200xbf16, #tpu.memory_space<vmem>>, %arg4: memref<1x200xf32, #tpu.memory_space<vmem>>, %arg5: memref<200x16xf32, #tpu.memory_space<vmem>>, %arg6: memref<1x16xf32, #tpu.memory_space<vmem>>, %arg7: memref<16x32xf32, #tpu.memory_space<vmem>>, %arg8: memref<1x32xf32, #tpu.memory_space<vmem>>, %arg9: memref<32x10xf32, #tpu.memory_space<vmem>>, %arg10: memref<1x10xf32, #tpu.memory_space<vmem>>, %arg11: memref<1x1x1xf32, #tpu.memory_space<vmem>>) attributes {dimension_semantics = [#tpu.dimension_semantics<parallel>], iteration_bounds = array<i64: 1>, scalar_prefetch = 0 : i64, scratch_operands = 0 : i64, tpu.core_type = #tpu.core_type<tc>, window_params = [{transform_indices = @transform_0, window_bounds = array<i64: 32, 625>}, {transform_indices = @transform_1, window_bounds = array<i64: 32, 625>}, {pipeline_mode = #tpu.pipeline_mode<synchronous>, transform_indices = @transform_2, window_bounds = array<i64: 625, 200>}, {pipeline_mode = #tpu.pipeline_mode<synchronous>, transform_indices = @transform_3, window_bounds = array<i64: 1, 200>}, {pipeline_mode = #tpu.pipeline_mode<synchronous>, transform_indices = @transform_4, window_bounds = array<i64: 200, 16>}, {pipeline_mode = #tpu.pipeline_mode<synchronous>, transform_indices = @transform_5, window_bounds = array<i64: 1, 16>}, {pipeline_mode = #tpu.pipeline_mode<synchronous>, transform_indices = @transform_6, window_bounds = array<i64: 16, 32>}, {pipeline_mode = #tpu.pipeline_mode<synchronous>, transform_indices = @transform_7, window_bounds = array<i64: 1, 32>}, {pipeline_mode = #tpu.pipeline_mode<synchronous>, transform_indices = @transform_8, window_bounds = array<i64: 32, 10>}, {pipeline_mode = #tpu.pipeline_mode<synchronous>, transform_indices = @transform_9, window_bounds = array<i64: 1, 10>}, {transform_indices = @transform_10, window_bounds = array<i64: 1, 1, 1>}]} {
    %c0 = arith.constant 0 : index
    %c0_0 = arith.constant 0 : index
    %0 = vector.load %arg1[%c0, %c0_0] : memref<32x625xbf16, #tpu.memory_space<vmem>>, vector<32x625xbf16>
    %c0_1 = arith.constant 0 : index
    %c0_2 = arith.constant 0 : index
    %1 = vector.load %arg2[%c0_1, %c0_2] : memref<32x625xbf16, #tpu.memory_space<vmem>>, vector<32x625xbf16>
    %2 = arith.mulf %1, %0 : vector<32x625xbf16>
    %c0_3 = arith.constant 0 : index
    %c0_4 = arith.constant 0 : index
    %3 = vector.load %arg3[%c0_3, %c0_4] : memref<625x200xbf16, #tpu.memory_space<vmem>>, vector<625x200xbf16>
    %cst = arith.constant dense<0.000000e+00> : vector<32x200xf32>
    %4 = tpu.matmul %2, %3, %cst {dimension_numbers = #tpu.dot_dimension_numbers<[1], [0], [0], [1], [0, 0, 1, 1], [], []>} : vector<32x625xbf16>, vector<625x200xbf16>, vector<32x200xf32> -> vector<32x200xf32>
    %cst_5 = arith.constant dense<0.000000e+00> : vector<32x200xf32>
    %5 = tpu.matmul %0, %3, %cst_5 {dimension_numbers = #tpu.dot_dimension_numbers<[1], [0], [0], [1], [0, 0, 1, 1], [], []>} : vector<32x625xbf16>, vector<625x200xbf16>, vector<32x200xf32> -> vector<32x200xf32>
    %6 = arith.subf %5, %4 : vector<32x200xf32>
    %c0_6 = arith.constant 0 : index
    %c0_7 = arith.constant 0 : index
    %7 = vector.load %arg4[%c0_6, %c0_7] : memref<1x200xf32, #tpu.memory_space<vmem>>, vector<1x200xf32>
    %8 = math.absf %4 : vector<32x200xf32>
    %cst_8 = arith.constant 9.99999968E-21 : f32
    %9 = vector.broadcast %cst_8 : f32 to vector<32x200xf32>
    %10 = arith.addf %8, %9 : vector<32x200xf32>
    %11 = math.absf %6 : vector<32x200xf32>
    %cst_9 = arith.constant 9.99999968E-21 : f32
    %12 = vector.broadcast %cst_9 : f32 to vector<32x200xf32>
    %13 = arith.addf %11, %12 : vector<32x200xf32>
    %14 = arith.addf %10, %13 : vector<32x200xf32>
    %cst_10 = arith.constant 1.000000e+00 : f32
    %15 = vector.broadcast %cst_10 : f32 to vector<32x200xf32>
    %16 = arith.divf %15, %14 : vector<32x200xf32>
    %17 = arith.mulf %10, %16 : vector<32x200xf32>
    %18 = vector.broadcast %7 : vector<1x200xf32> to vector<32x200xf32>
    %19 = arith.mulf %17, %18 : vector<32x200xf32>
    %20 = arith.addf %4, %19 : vector<32x200xf32>
    %21 = arith.mulf %13, %16 : vector<32x200xf32>
    %22 = vector.broadcast %7 : vector<1x200xf32> to vector<32x200xf32>
    %23 = arith.mulf %21, %22 : vector<32x200xf32>
    %24 = arith.addf %6, %23 : vector<32x200xf32>
    %25 = vector.extract_strided_slice %20 {offsets = [0, 0], sizes = [8, 200], strides = [1, 1]} : vector<32x200xf32> to vector<8x200xf32>
    %26 = vector.extract_strided_slice %24 {offsets = [0, 0], sizes = [8, 200], strides = [1, 1]} : vector<32x200xf32> to vector<8x200xf32>
    %27 = arith.addf %25, %26 : vector<8x200xf32>
    %28 = vector.extract_strided_slice %20 {offsets = [8, 0], sizes = [8, 200], strides = [1, 1]} : vector<32x200xf32> to vector<8x200xf32>
    %29 = vector.extract_strided_slice %24 {offsets = [8, 0], sizes = [8, 200], strides = [1, 1]} : vector<32x200xf32> to vector<8x200xf32>
    %30 = arith.addf %28, %29 : vector<8x200xf32>
    %31 = arith.cmpf ogt, %30, %27 : vector<8x200xf32>
    %32 = arith.select %31, %30, %27 : vector<8x200xi1>, vector<8x200xf32>
    %33 = arith.select %31, %28, %25 : vector<8x200xi1>, vector<8x200xf32>
    %34 = arith.select %31, %29, %26 : vector<8x200xi1>, vector<8x200xf32>
    %35 = vector.extract_strided_slice %20 {offsets = [16, 0], sizes = [8, 200], strides = [1, 1]} : vector<32x200xf32> to vector<8x200xf32>
    %36 = vector.extract_strided_slice %24 {offsets = [16, 0], sizes = [8, 200], strides = [1, 1]} : vector<32x200xf32> to vector<8x200xf32>
    %37 = arith.addf %35, %36 : vector<8x200xf32>
    %38 = arith.cmpf ogt, %37, %32 : vector<8x200xf32>
    %39 = arith.select %38, %37, %32 : vector<8x200xi1>, vector<8x200xf32>
    %40 = arith.select %38, %35, %33 : vector<8x200xi1>, vector<8x200xf32>
    %41 = arith.select %38, %36, %34 : vector<8x200xi1>, vector<8x200xf32>
    %42 = vector.extract_strided_slice %20 {offsets = [24, 0], sizes = [8, 200], strides = [1, 1]} : vector<32x200xf32> to vector<8x200xf32>
    %43 = vector.extract_strided_slice %24 {offsets = [24, 0], sizes = [8, 200], strides = [1, 1]} : vector<32x200xf32> to vector<8x200xf32>
    %44 = arith.addf %42, %43 : vector<8x200xf32>
    %45 = arith.cmpf ogt, %44, %39 : vector<8x200xf32>
    %46 = arith.select %45, %42, %40 : vector<8x200xi1>, vector<8x200xf32>
    %47 = arith.select %45, %43, %41 : vector<8x200xi1>, vector<8x200xf32>
    %cst_11 = arith.constant 0.000000e+00 : f32
    %48 = vector.broadcast %cst_11 : f32 to vector<8x200xf32>
    %49 = arith.maximumf %46, %48 : vector<8x200xf32>
    %50 = arith.addf %46, %47 : vector<8x200xf32>
    %cst_12 = arith.constant 0.000000e+00 : f32
    %51 = vector.broadcast %cst_12 : f32 to vector<8x200xf32>
    %52 = arith.maximumf %50, %51 : vector<8x200xf32>
    %53 = arith.subf %52, %49 : vector<8x200xf32>
    %c0_13 = arith.constant 0 : index
    %c0_14 = arith.constant 0 : index
    %54 = vector.load %arg5[%c0_13, %c0_14] : memref<200x16xf32, #tpu.memory_space<vmem>>, vector<200x16xf32>
    %cst_15 = arith.constant dense<0.000000e+00> : vector<8x16xf32>
    %55 = tpu.matmul %49, %54, %cst_15 {dimension_numbers = #tpu.dot_dimension_numbers<[1], [0], [0], [1], [0, 0, 1, 1], [], []>} : vector<8x200xf32>, vector<200x16xf32>, vector<8x16xf32> -> vector<8x16xf32>
    %cst_16 = arith.constant dense<0.000000e+00> : vector<8x16xf32>
    %56 = tpu.matmul %53, %54, %cst_16 {dimension_numbers = #tpu.dot_dimension_numbers<[1], [0], [0], [1], [0, 0, 1, 1], [], []>} : vector<8x200xf32>, vector<200x16xf32>, vector<8x16xf32> -> vector<8x16xf32>
    %c0_17 = arith.constant 0 : index
    %c0_18 = arith.constant 0 : index
    %57 = vector.load %arg6[%c0_17, %c0_18] : memref<1x16xf32, #tpu.memory_space<vmem>>, vector<1x16xf32>
    %58 = math.absf %55 : vector<8x16xf32>
    %cst_19 = arith.constant 9.99999968E-21 : f32
    %59 = vector.broadcast %cst_19 : f32 to vector<8x16xf32>
    %60 = arith.addf %58, %59 : vector<8x16xf32>
    %61 = math.absf %56 : vector<8x16xf32>
    %cst_20 = arith.constant 9.99999968E-21 : f32
    %62 = vector.broadcast %cst_20 : f32 to vector<8x16xf32>
    %63 = arith.addf %61, %62 : vector<8x16xf32>
    %64 = arith.addf %60, %63 : vector<8x16xf32>
    %cst_21 = arith.constant 1.000000e+00 : f32
    %65 = vector.broadcast %cst_21 : f32 to vector<8x16xf32>
    %66 = arith.divf %65, %64 : vector<8x16xf32>
    %67 = arith.mulf %60, %66 : vector<8x16xf32>
    %68 = vector.broadcast %57 : vector<1x16xf32> to vector<8x16xf32>
    %69 = arith.mulf %67, %68 : vector<8x16xf32>
    %70 = arith.addf %55, %69 : vector<8x16xf32>
    %71 = arith.mulf %63, %66 : vector<8x16xf32>
    %72 = vector.broadcast %57 : vector<1x16xf32> to vector<8x16xf32>
    %73 = arith.mulf %71, %72 : vector<8x16xf32>
    %74 = arith.addf %56, %73 : vector<8x16xf32>
    %75 = vector.extract_strided_slice %70 {offsets = [0, 0], sizes = [2, 16], strides = [1, 1]} : vector<8x16xf32> to vector<2x16xf32>
    %76 = vector.extract_strided_slice %74 {offsets = [0, 0], sizes = [2, 16], strides = [1, 1]} : vector<8x16xf32> to vector<2x16xf32>
    %77 = arith.addf %75, %76 : vector<2x16xf32>
    %78 = vector.extract_strided_slice %70 {offsets = [2, 0], sizes = [2, 16], strides = [1, 1]} : vector<8x16xf32> to vector<2x16xf32>
    %79 = vector.extract_strided_slice %74 {offsets = [2, 0], sizes = [2, 16], strides = [1, 1]} : vector<8x16xf32> to vector<2x16xf32>
    %80 = arith.addf %78, %79 : vector<2x16xf32>
    %81 = arith.cmpf ogt, %80, %77 : vector<2x16xf32>
    %82 = arith.select %81, %80, %77 : vector<2x16xi1>, vector<2x16xf32>
    %83 = arith.select %81, %78, %75 : vector<2x16xi1>, vector<2x16xf32>
    %84 = arith.select %81, %79, %76 : vector<2x16xi1>, vector<2x16xf32>
    %85 = vector.extract_strided_slice %70 {offsets = [4, 0], sizes = [2, 16], strides = [1, 1]} : vector<8x16xf32> to vector<2x16xf32>
    %86 = vector.extract_strided_slice %74 {offsets = [4, 0], sizes = [2, 16], strides = [1, 1]} : vector<8x16xf32> to vector<2x16xf32>
    %87 = arith.addf %85, %86 : vector<2x16xf32>
    %88 = arith.cmpf ogt, %87, %82 : vector<2x16xf32>
    %89 = arith.select %88, %87, %82 : vector<2x16xi1>, vector<2x16xf32>
    %90 = arith.select %88, %85, %83 : vector<2x16xi1>, vector<2x16xf32>
    %91 = arith.select %88, %86, %84 : vector<2x16xi1>, vector<2x16xf32>
    %92 = vector.extract_strided_slice %70 {offsets = [6, 0], sizes = [2, 16], strides = [1, 1]} : vector<8x16xf32> to vector<2x16xf32>
    %93 = vector.extract_strided_slice %74 {offsets = [6, 0], sizes = [2, 16], strides = [1, 1]} : vector<8x16xf32> to vector<2x16xf32>
    %94 = arith.addf %92, %93 : vector<2x16xf32>
    %95 = arith.cmpf ogt, %94, %89 : vector<2x16xf32>
    %96 = arith.select %95, %92, %90 : vector<2x16xi1>, vector<2x16xf32>
    %97 = arith.select %95, %93, %91 : vector<2x16xi1>, vector<2x16xf32>
    %cst_22 = arith.constant 0.000000e+00 : f32
    %98 = vector.broadcast %cst_22 : f32 to vector<2x16xf32>
    %99 = arith.maximumf %96, %98 : vector<2x16xf32>
    %100 = arith.addf %96, %97 : vector<2x16xf32>
    %cst_23 = arith.constant 0.000000e+00 : f32
    %101 = vector.broadcast %cst_23 : f32 to vector<2x16xf32>
    %102 = arith.maximumf %100, %101 : vector<2x16xf32>
    %103 = arith.subf %102, %99 : vector<2x16xf32>
    %c0_24 = arith.constant 0 : index
    %c0_25 = arith.constant 0 : index
    %104 = vector.load %arg7[%c0_24, %c0_25] : memref<16x32xf32, #tpu.memory_space<vmem>>, vector<16x32xf32>
    %cst_26 = arith.constant dense<0.000000e+00> : vector<2x32xf32>
    %105 = tpu.matmul %99, %104, %cst_26 {dimension_numbers = #tpu.dot_dimension_numbers<[1], [0], [0], [1], [0, 0, 1, 1], [], []>} : vector<2x16xf32>, vector<16x32xf32>, vector<2x32xf32> -> vector<2x32xf32>
    %c0_27 = arith.constant 0 : index
    %c0_28 = arith.constant 0 : index
    %106 = vector.load %arg7[%c0_27, %c0_28] : memref<16x32xf32, #tpu.memory_space<vmem>>, vector<16x32xf32>
    %cst_29 = arith.constant dense<0.000000e+00> : vector<2x32xf32>
    %107 = tpu.matmul %103, %106, %cst_29 {dimension_numbers = #tpu.dot_dimension_numbers<[1], [0], [0], [1], [0, 0, 1, 1], [], []>} : vector<2x16xf32>, vector<16x32xf32>, vector<2x32xf32> -> vector<2x32xf32>
    %c0_30 = arith.constant 0 : index
    %c0_31 = arith.constant 0 : index
    %108 = vector.load %arg8[%c0_30, %c0_31] : memref<1x32xf32, #tpu.memory_space<vmem>>, vector<1x32xf32>
    %109 = math.absf %105 : vector<2x32xf32>
    %cst_32 = arith.constant 9.99999968E-21 : f32
    %110 = vector.broadcast %cst_32 : f32 to vector<2x32xf32>
    %111 = arith.addf %109, %110 : vector<2x32xf32>
    %112 = math.absf %107 : vector<2x32xf32>
    %cst_33 = arith.constant 9.99999968E-21 : f32
    %113 = vector.broadcast %cst_33 : f32 to vector<2x32xf32>
    %114 = arith.addf %112, %113 : vector<2x32xf32>
    %115 = arith.addf %111, %114 : vector<2x32xf32>
    %cst_34 = arith.constant 1.000000e+00 : f32
    %116 = vector.broadcast %cst_34 : f32 to vector<2x32xf32>
    %117 = arith.divf %116, %115 : vector<2x32xf32>
    %118 = arith.mulf %111, %117 : vector<2x32xf32>
    %119 = vector.broadcast %108 : vector<1x32xf32> to vector<2x32xf32>
    %120 = arith.mulf %118, %119 : vector<2x32xf32>
    %121 = arith.addf %105, %120 : vector<2x32xf32>
    %122 = arith.mulf %114, %117 : vector<2x32xf32>
    %123 = vector.broadcast %108 : vector<1x32xf32> to vector<2x32xf32>
    %124 = arith.mulf %122, %123 : vector<2x32xf32>
    %125 = arith.addf %107, %124 : vector<2x32xf32>
    %cst_35 = arith.constant 0.000000e+00 : f32
    %126 = vector.broadcast %cst_35 : f32 to vector<2x32xf32>
    %127 = arith.maximumf %121, %126 : vector<2x32xf32>
    %128 = arith.addf %121, %125 : vector<2x32xf32>
    %cst_36 = arith.constant 0.000000e+00 : f32
    %129 = vector.broadcast %cst_36 : f32 to vector<2x32xf32>
    %130 = arith.maximumf %128, %129 : vector<2x32xf32>
    %131 = arith.subf %130, %127 : vector<2x32xf32>
    %c0_37 = arith.constant 0 : index
    %c0_38 = arith.constant 0 : index
    %132 = vector.load %arg9[%c0_37, %c0_38] : memref<32x10xf32, #tpu.memory_space<vmem>>, vector<32x10xf32>
    %cst_39 = arith.constant dense<0.000000e+00> : vector<2x10xf32>
    %133 = tpu.matmul %127, %132, %cst_39 {dimension_numbers = #tpu.dot_dimension_numbers<[1], [0], [0], [1], [0, 0, 1, 1], [], []>} : vector<2x32xf32>, vector<32x10xf32>, vector<2x10xf32> -> vector<2x10xf32>
    %c0_40 = arith.constant 0 : index
    %c0_41 = arith.constant 0 : index
    %134 = vector.load %arg9[%c0_40, %c0_41] : memref<32x10xf32, #tpu.memory_space<vmem>>, vector<32x10xf32>
    %cst_42 = arith.constant dense<0.000000e+00> : vector<2x10xf32>
    %135 = tpu.matmul %131, %134, %cst_42 {dimension_numbers = #tpu.dot_dimension_numbers<[1], [0], [0], [1], [0, 0, 1, 1], [], []>} : vector<2x32xf32>, vector<32x10xf32>, vector<2x10xf32> -> vector<2x10xf32>
    %c0_43 = arith.constant 0 : index
    %c0_44 = arith.constant 0 : index
    %136 = vector.load %arg10[%c0_43, %c0_44] : memref<1x10xf32, #tpu.memory_space<vmem>>, vector<1x10xf32>
    %137 = math.absf %133 : vector<2x10xf32>
    %cst_45 = arith.constant 9.99999968E-21 : f32
    %138 = vector.broadcast %cst_45 : f32 to vector<2x10xf32>
    %139 = arith.addf %137, %138 : vector<2x10xf32>
    %140 = math.absf %135 : vector<2x10xf32>
    %cst_46 = arith.constant 9.99999968E-21 : f32
    %141 = vector.broadcast %cst_46 : f32 to vector<2x10xf32>
    %142 = arith.addf %140, %141 : vector<2x10xf32>
    %143 = arith.addf %139, %142 : vector<2x10xf32>
    %cst_47 = arith.constant 1.000000e+00 : f32
    %144 = vector.broadcast %cst_47 : f32 to vector<2x10xf32>
    %145 = arith.divf %144, %143 : vector<2x10xf32>
    %146 = arith.mulf %139, %145 : vector<2x10xf32>
    %147 = vector.broadcast %136 : vector<1x10xf32> to vector<2x10xf32>
    %148 = arith.mulf %146, %147 : vector<2x10xf32>
    %149 = arith.addf %133, %148 : vector<2x10xf32>
    %150 = arith.mulf %142, %145 : vector<2x10xf32>
    %151 = vector.broadcast %136 : vector<1x10xf32> to vector<2x10xf32>
    %152 = arith.mulf %150, %151 : vector<2x10xf32>
    %153 = arith.addf %135, %152 : vector<2x10xf32>
    %154 = arith.subf %149, %153 : vector<2x10xf32>
    %cst_48 = arith.constant 5.000000e-01 : f32
    %155 = vector.broadcast %cst_48 : f32 to vector<2x10xf32>
    %156 = arith.mulf %155, %154 : vector<2x10xf32>
    %157 = math.tanh %156 : vector<2x10xf32>
    %cst_49 = arith.constant 1.000000e+00 : f32
    %158 = vector.broadcast %cst_49 : f32 to vector<2x10xf32>
    %159 = arith.addf %157, %158 : vector<2x10xf32>
    %cst_50 = arith.constant 5.000000e-01 : f32
    %160 = vector.broadcast %cst_50 : f32 to vector<2x10xf32>
    %161 = arith.mulf %160, %159 : vector<2x10xf32>
    %162 = vector.shape_cast %161 : vector<2x10xf32> to vector<1x2x10xf32>
    %cst_51 = arith.constant dense<0.000000e+00> : vector<1xf32>
    %163 = vector.multi_reduction <add>, %162, %cst_51 [1, 2] : vector<1x2x10xf32> to vector<1xf32>
    %164 = vector.shape_cast %163 : vector<1xf32> to vector<1x1x1xf32>
    %165 = vector.extract %164[0, 0, 0] : f32 from vector<1x1x1xf32>
    %166 = vector.broadcast %165 : f32 to vector<1x1xf32>
    %c0_52 = arith.constant 0 : index
    %c0_53 = arith.constant 0 : index
    %c0_54 = arith.constant 0 : index
    %167 = vector.load %arg11[%c0_52, %c0_53, %c0_54] : memref<1x1x1xf32, #tpu.memory_space<vmem>>, vector<1x1x1xf32>
    %168 = vector.shape_cast %167 : vector<1x1x1xf32> to vector<1x1xf32>
    %169 = vector.shape_cast %166 : vector<1x1xf32> to vector<1x1x1xf32>
    tpu.vector_store %arg11[%c0_52, %c0_53, %c0_54], %169 {strides = array<i32>} : memref<1x1x1xf32, #tpu.memory_space<vmem>>, vector<1x1x1xf32>,
    return
  }
  func.func @transform_0(%arg0: i32) -> (i32, i32) {
    %c0_i32 = arith.constant 0 : i32
    %c0_i32_0 = arith.constant 0 : i32
    return %arg0, %c0_i32 : i32, i32
  }
  func.func @transform_1(%arg0: i32) -> (i32, i32) {
    %c0_i32 = arith.constant 0 : i32
    %c0_i32_0 = arith.constant 0 : i32
    return %arg0, %c0_i32 : i32, i32
  }
  func.func @transform_2(%arg0: i32) -> (i32, i32) {
    %c0_i32 = arith.constant 0 : i32
    %c0_i32_0 = arith.constant 0 : i32
    %c0_i32_1 = arith.constant 0 : i32
    return %c0_i32, %c0_i32_0 : i32, i32
  }
  func.func @transform_3(%arg0: i32) -> (i32, i32) {
    %c0_i32 = arith.constant 0 : i32
    %c0_i32_0 = arith.constant 0 : i32
    %c0_i32_1 = arith.constant 0 : i32
    return %c0_i32, %c0_i32_0 : i32, i32
  }
  func.func @transform_4(%arg0: i32) -> (i32, i32) {
    %c0_i32 = arith.constant 0 : i32
    %c0_i32_0 = arith.constant 0 : i32
    %c0_i32_1 = arith.constant 0 : i32
    return %c0_i32, %c0_i32_0 : i32, i32
  }
  func.func @transform_5(%arg0: i32) -> (i32, i32) {
    %c0_i32 = arith.constant 0 : i32
    %c0_i32_0 = arith.constant 0 : i32
    %c0_i32_1 = arith.constant 0 : i32
    return %c0_i32, %c0_i32_0 : i32, i32
  }
  func.func @transform_6(%arg0: i32) -> (i32, i32) {
    %c0_i32 = arith.constant 0 : i32
    %c0_i32_0 = arith.constant 0 : i32
    %c0_i32_1 = arith.constant 0 : i32
    return %c0_i32, %c0_i32_0 : i32, i32
  }
  func.func @transform_7(%arg0: i32) -> (i32, i32) {
    %c0_i32 = arith.constant 0 : i32
    %c0_i32_0 = arith.constant 0 : i32
    %c0_i32_1 = arith.constant 0 : i32
    return %c0_i32, %c0_i32_0 : i32, i32
  }
  func.func @transform_8(%arg0: i32) -> (i32, i32) {
    %c0_i32 = arith.constant 0 : i32
    %c0_i32_0 = arith.constant 0 : i32
    %c0_i32_1 = arith.constant 0 : i32
    return %c0_i32, %c0_i32_0 : i32, i32
  }
  func.func @transform_9(%arg0: i32) -> (i32, i32) {
    %c0_i32 = arith.constant 0 : i32
    %c0_i32_0 = arith.constant 0 : i32
    %c0_i32_1 = arith.constant 0 : i32
    return %c0_i32, %c0_i32_0 : i32, i32
  }
  func.func @transform_10(%arg0: i32) -> (i32, i32, i32) {
    %c0_i32 = arith.constant 0 : i32
    %c0_i32_0 = arith.constant 0 : i32
    %c0_i32_1 = arith.constant 0 : i32
    return %arg0, %c0_i32, %c0_i32_0 : i32, i32, i32
  }
}

</mosaic_0001>

<llo_original>
// kernel: _lambda_.1
$region0: #{_lambda_.1}
  #allocation0 [shape = 'u32[]', space=smem, size = 0x4, offset = 0x4, fixed_abs, tag = 'smem constant byte address 0x4 - core index']
  #allocation1 [shape = 'u32[144,128]{1,0:T(1,128)}', space=vmem, size = 0x12000, scoped, tag = 'internal scratch']
  %s0 = inlined_call_operand.vmem [shape: bf16[32,625], index: 0, kind: input, shape index: {}]
  %s1 = inlined_call_operand.vmem [shape: bf16[32,625], index: 1, kind: input, shape index: {}]
  %s2 = inlined_call_operand.vmem [shape: bf16[625,200], index: 2, kind: input, shape index: {}]
  %s3 = inlined_call_operand.vmem [shape: f32[1,200], index: 3, kind: input, shape index: {}]
  %s4 = inlined_call_operand.vmem [shape: f32[200,16], index: 4, kind: input, shape index: {}]
  %s5 = inlined_call_operand.vmem [shape: f32[1,16], index: 5, kind: input, shape index: {}]
  %s6 = inlined_call_operand.vmem [shape: f32[16,32], index: 6, kind: input, shape index: {}]
  %s7 = inlined_call_operand.vmem [shape: f32[1,32], index: 7, kind: input, shape index: {}]
  %s8 = inlined_call_operand.vmem [shape: f32[32,10], index: 8, kind: input, shape index: {}]
  %s9 = inlined_call_operand.vmem [shape: f32[1,10], index: 9, kind: input, shape index: {}]
  %s10 = inlined_call_operand.hbm [shape: f32[1,1,1], index: 10, kind: output, shape index: {}]
  %s11 = sld [smem:[#allocation0]]
  $region50: #{_lambda_.1} parent=0
    _
  %s13 = ssub.s32 1, %s11
  %s14 = scalar_select 0, %s13, %s11
  $region1: #{_lambda_.1} parent=0
    #allocation2 [shape = 'u8[512]{0}', space=vmem, size = 0x400, scoped, tag = 'output window, operand 0, single buffered']
    #allocation3 [shape = 's32[1]{0}', space=sflag, size = 0x4, scoped, tag = 'scoped memory for _lambda_.1']
    %15 = vsyncpa [#allocation3], 0
    // Predicated region
    $region2: #{_lambda_.1} parent=1 // pred_check
      _
    $region3: #{_lambda_.1} parent=1 // pred_check_branch
      %17 = sbr.rel (0) target = $region5
    $region4: #{_lambda_.1} parent=1 // pred_region
      _
    $region5: #{_lambda_.1} parent=1 // pred_fallthru
      _
    // Predicated region
    $region6: #{_lambda_.1} parent=1 // pred_check
      _
    $region7: #{_lambda_.1} parent=1 // pred_check_branch
      %19 = sbr.rel (0) target = $region9
    $region8: #{_lambda_.1} parent=1 // pred_region
      _
    $region9: #{_lambda_.1} parent=1 // pred_fallthru
      _
    // Predicated region
    $region10: #{_lambda_.1} parent=1 // pred_check
      _
    $region11: #{_lambda_.1} parent=1 // pred_check_branch
      %21 = sbr.rel (0) target = $region13
    $region12: #{_lambda_.1} parent=1 // pred_region
      _
    $region13: #{_lambda_.1} parent=1 // pred_fallthru
      _
    // Predicated region
    $region14: #{_lambda_.1} parent=1 // pred_check
      _
    $region15: #{_lambda_.1} parent=1 // pred_check_branch
      %23 = sbr.rel (0) target = $region17
    $region16: #{_lambda_.1} parent=1 // pred_region
      _
    $region17: #{_lambda_.1} parent=1 // pred_fallthru
      _
    // Predicated region
    $region18: #{_lambda_.1} parent=1 // pred_check
      _
    $region19: #{_lambda_.1} parent=1 // pred_check_branch
      %25 = sbr.rel (0) target = $region21
    $region20: #{_lambda_.1} parent=1 // pred_region
      _
    $region21: #{_lambda_.1} parent=1 // pred_fallthru
      _
    // Predicated region
    $region22: #{_lambda_.1} parent=1 // pred_check
      _
    $region23: #{_lambda_.1} parent=1 // pred_check_branch
      %27 = sbr.rel (0) target = $region25
    $region24: #{_lambda_.1} parent=1 // pred_region
      _
    $region25: #{_lambda_.1} parent=1 // pred_fallthru
      _
    // Predicated region
    $region26: #{_lambda_.1} parent=1 // pred_check
      _
    $region27: #{_lambda_.1} parent=1 // pred_check_branch
      %29 = sbr.rel (0) target = $region29
    $region28: #{_lambda_.1} parent=1 // pred_region
      _
    $region29: #{_lambda_.1} parent=1 // pred_fallthru
      _
    // Predicated region
    $region30: #{_lambda_.1} parent=1 // pred_check
      _
    $region31: #{_lambda_.1} parent=1 // pred_check_branch
      %31 = sbr.rel (0) target = $region33
    $region32: #{_lambda_.1} parent=1 // pred_region
      _
    $region33: #{_lambda_.1} parent=1 // pred_fallthru
      _
    // Predicated region
    $region34: #{_lambda_.1} parent=1 // pred_check
      _
    $region35: #{_lambda_.1} parent=1 // pred_check_branch
      %33 = sbr.rel (0) target = $region37
    $region36: #{_lambda_.1} parent=1 // pred_region
      _
    $region37: #{_lambda_.1} parent=1 // pred_fallthru
      _
    // Predicated region
    $region38: #{_lambda_.1} parent=1 // pred_check
      _
    $region39: #{_lambda_.1} parent=1 // pred_check_branch
      %35 = sbr.rel (0) target = $region41
    $region40: #{_lambda_.1} parent=1 // pred_region
      _
    $region41: #{_lambda_.1} parent=1 // pred_fallthru
      _
    %v37 = vld [vmem:[%s0] sm:$0xff]
    %v38 = vld [vmem:[%s0 + $0x8] sm:$0xff]
    %v39 = vld [vmem:[%s0 + $0x10] sm:$0xf]
    %v40 = vld [vmem:[%s0 + $0x14] sm:$0xff]
    %v41 = vld [vmem:[%s0 + $0x1c] sm:$0xff]
    %v42 = vld [vmem:[%s0 + $0x24] sm:$0xf]
    %v43 = vld [vmem:[%s0 + $0x28] sm:$0xff]
    %v44 = vld [vmem:[%s0 + $0x30] sm:$0xff]
    %v45 = vld [vmem:[%s0 + $0x38] sm:$0xf]
    %v46 = vld [vmem:[%s0 + $0x3c] sm:$0xff]
    %v47 = vld [vmem:[%s0 + $0x44] sm:$0xff]
    %v48 = vld [vmem:[%s0 + $0x4c] sm:$0xf]
    %v49 = vld [vmem:[%s1] sm:$0xff]
    %v50 = vld [vmem:[%s1 + $0x8] sm:$0xff]
    %v51 = vld [vmem:[%s1 + $0x10] sm:$0xf]
    %v52 = vld [vmem:[%s1 + $0x14] sm:$0xff]
    %v53 = vld [vmem:[%s1 + $0x1c] sm:$0xff]
    %v54 = vld [vmem:[%s1 + $0x24] sm:$0xf]
    %v55 = vld [vmem:[%s1 + $0x28] sm:$0xff]
    %v56 = vld [vmem:[%s1 + $0x30] sm:$0xff]
    %v57 = vld [vmem:[%s1 + $0x38] sm:$0xf]
    %v58 = vld [vmem:[%s1 + $0x3c] sm:$0xff]
    %v59 = vld [vmem:[%s1 + $0x44] sm:$0xff]
    %v60 = vld [vmem:[%s1 + $0x4c] sm:$0xf]
    %v61 = vmul.bf16 %v49, %v37
    %v62 = vmul.bf16 %v50, %v38
    %v63 = vmul.bf16 %v51, %v39
    %v64 = vmul.bf16 %v52, %v40
    %v65 = vmul.bf16 %v53, %v41
    %v66 = vmul.bf16 %v54, %v42
    %v67 = vmul.bf16 %v55, %v43
    %v68 = vmul.bf16 %v56, %v44
    %v69 = vmul.bf16 %v57, %v45
    %v70 = vmul.bf16 %v58, %v46
    %v71 = vmul.bf16 %v59, %v47
    %v72 = vmul.bf16 %v60, %v48
    %v73 = vld [vmem:[%s2] sm:$0xff]
    %v74 = vld [vmem:[%s2 + $0x8] sm:$0xff]
    %v75 = vld [vmem:[%s2 + $0x10] sm:$0xff]
    %v76 = vld [vmem:[%s2 + $0x18] sm:$0xff]
    %v77 = vld [vmem:[%s2 + $0x20] sm:$0xff]
    %v78 = vld [vmem:[%s2 + $0x28] sm:$0xff]
    %v79 = vld [vmem:[%s2 + $0x30] sm:$0xff]
    %v80 = vld [vmem:[%s2 + $0x38] sm:$0xff]
    %v81 = vld [vmem:[%s2 + $0x40] sm:$0xff]
    %v82 = vld [vmem:[%s2 + $0x48] sm:$0xff]
    %v83 = vld [vmem:[%s2 + $0x50] sm:$0xff]
    %v84 = vld [vmem:[%s2 + $0x58] sm:$0xff]
    %v85 = vld [vmem:[%s2 + $0x60] sm:$0xff]
    %v86 = vld [vmem:[%s2 + $0x68] sm:$0xff]
    %v87 = vld [vmem:[%s2 + $0x70] sm:$0xff]
    %v88 = vld [vmem:[%s2 + $0x78] sm:$0xff]
    %v89 = vld [vmem:[%s2 + $0x80] sm:$0xff]
    %v90 = vld [vmem:[%s2 + $0x88] sm:$0xff]
    %v91 = vld [vmem:[%s2 + $0x90] sm:$0xff]
    %v92 = vld [vmem:[%s2 + $0x98] sm:$0xff]
    %v93 = vld [vmem:[%s2 + $0xa0] sm:$0xff]
    %v94 = vld [vmem:[%s2 + $0xa8] sm:$0xff]
    %v95 = vld [vmem:[%s2 + $0xb0] sm:$0xff]
    %v96 = vld [vmem:[%s2 + $0xb8] sm:$0xff]
    %v97 = vld [vmem:[%s2 + $0xc0] sm:$0xff]
    %v98 = vld [vmem:[%s2 + $0xc8] sm:$0xff]
    %v99 = vld [vmem:[%s2 + $0xd0] sm:$0xff]
    %v100 = vld [vmem:[%s2 + $0xd8] sm:$0xff]
    %v101 = vld [vmem:[%s2 + $0xe0] sm:$0xff]
    %v102 = vld [vmem:[%s2 + $0xe8] sm:$0xff]
    %v103 = vld [vmem:[%s2 + $0xf0] sm:$0xff]
    %v104 = vld [vmem:[%s2 + $0xf8] sm:$0xff]
    %v105 = vld [vmem:[%s2 + $0x100] sm:$0xff]
    %v106 = vld [vmem:[%s2 + $0x108] sm:$0xff]
    %v107 = vld [vmem:[%s2 + $0x110] sm:$0xff]
    %v108 = vld [vmem:[%s2 + $0x118] sm:$0xff]
    %v109 = vld [vmem:[%s2 + $0x120] sm:$0xff]
    %v110 = vld [vmem:[%s2 + $0x128] sm:$0xff]
    %v111 = vld [vmem:[%s2 + $0x130] sm:$0xff]
    %v112 = vld [vmem:[%s2 + $0x138] sm:$0xff]
    %v113 = vld [vmem:[%s2 + $0x140] sm:$0xff]
    %v114 = vld [vmem:[%s2 + $0x148] sm:$0xff]
    %v115 = vld [vmem:[%s2 + $0x150] sm:$0xff]
    %v116 = vld [vmem:[%s2 + $0x158] sm:$0xff]
    %v117 = vld [vmem:[%s2 + $0x160] sm:$0xff]
    %v118 = vld [vmem:[%s2 + $0x168] sm:$0xff]
    %v119 = vld [vmem:[%s2 + $0x170] sm:$0xff]
    %v120 = vld [vmem:[%s2 + $0x178] sm:$0xff]
    %v121 = vld [vmem:[%s2 + $0x180] sm:$0xff]
    %v122 = vld [vmem:[%s2 + $0x188] sm:$0xff]
    %v123 = vld [vmem:[%s2 + $0x190] sm:$0xff]
    %v124 = vld [vmem:[%s2 + $0x198] sm:$0xff]
    %v125 = vld [vmem:[%s2 + $0x1a0] sm:$0xff]
    %v126 = vld [vmem:[%s2 + $0x1a8] sm:$0xff]
    %v127 = vld [vmem:[%s2 + $0x1b0] sm:$0xff]
    %v128 = vld [vmem:[%s2 + $0x1b8] sm:$0xff]
    %v129 = vld [vmem:[%s2 + $0x1c0] sm:$0xff]
    %v130 = vld [vmem:[%s2 + $0x1c8] sm:$0xff]
    %v131 = vld [vmem:[%s2 + $0x1d0] sm:$0xff]
    %v132 = vld [vmem:[%s2 + $0x1d8] sm:$0xff]
    %v133 = vld [vmem:[%s2 + $0x1e0] sm:$0xff]
    %v134 = vld [vmem:[%s2 + $0x1e8] sm:$0xff]
    %v135 = vld [vmem:[%s2 + $0x1f0] sm:$0xff]
    %v136 = vld [vmem:[%s2 + $0x1f8] sm:$0xff]
    %v137 = vld [vmem:[%s2 + $0x200] sm:$0xff]
    %v138 = vld [vmem:[%s2 + $0x208] sm:$0xff]
    %v139 = vld [vmem:[%s2 + $0x210] sm:$0xff]
    %v140 = vld [vmem:[%s2 + $0x218] sm:$0xff]
    %v141 = vld [vmem:[%s2 + $0x220] sm:$0xff]
    %v142 = vld [vmem:[%s2 + $0x228] sm:$0xff]
    %v143 = vld [vmem:[%s2 + $0x230] sm:$0xff]
    %v144 = vld [vmem:[%s2 + $0x238] sm:$0xff]
    %v145 = vld [vmem:[%s2 + $0x240] sm:$0xff]
    %v146 = vld [vmem:[%s2 + $0x248] sm:$0xff]
    %v147 = vld [vmem:[%s2 + $0x250] sm:$0xff]
    %v148 = vld [vmem:[%s2 + $0x258] sm:$0xff]
    %v149 = vld [vmem:[%s2 + $0x260] sm:$0xff]
    %v150 = vld [vmem:[%s2 + $0x268] sm:$0xff]
    %v151 = vld [vmem:[%s2 + $0x270] sm:$0x11]
    %v164 = vunpack.c.l.b16 %v61
    %v165 = vunpack.c.h.b16 %v61
    %v166 = vunpack.c.l.b16 %v62
    %v167 = vunpack.c.h.b16 %v62
    %v168 = vunpack.c.l.b16 %v63
    %v169 = vunpack.c.l.b16 %v64
    %v170 = vunpack.c.h.b16 %v64
    %v171 = vunpack.c.l.b16 %v65
    %v172 = vunpack.c.h.b16 %v65
    %v173 = vunpack.c.l.b16 %v66
    %v174 = vunpack.c.l.b16 %v67
    %v175 = vunpack.c.h.b16 %v67
    %v176 = vunpack.c.l.b16 %v68
    %v177 = vunpack.c.h.b16 %v68
    %v178 = vunpack.c.l.b16 %v69
    %v179 = vunpack.c.l.b16 %v70
    %v180 = vunpack.c.h.b16 %v70
    %v181 = vunpack.c.l.b16 %v71
    %v182 = vunpack.c.h.b16 %v71
    %v183 = vunpack.c.l.b16 %v72
    %v184 = vpack.c.b16 %v169, %v164
    %v185 = vpack.c.b16 %v170, %v165
    %v186 = vpack.c.b16 %v171, %v166
    %v187 = vpack.c.b16 %v172, %v167
    %v188 = vpack.c.b16 %v173, %v168
    %v189 = vpack.c.b16 %v179, %v174
    %v190 = vpack.c.b16 %v180, %v175
    %v191 = vpack.c.b16 %v181, %v176
    %v192 = vpack.c.b16 %v182, %v177
    %v193 = vpack.c.b16 %v183, %v178
    %v281 = vunpack.c.l.b16 %v73
    %v282 = vunpack.c.h.b16 %v73
    %v283 = vunpack.c.l.b16 %v74
    %v284 = vunpack.c.h.b16 %v74
    %v285 = vunpack.c.l.b16 %v75
    %v286 = vunpack.c.h.b16 %v75
    %v287 = vunpack.c.l.b16 %v76
    %v288 = vunpack.c.h.b16 %v76
    %v289 = vunpack.c.l.b16 %v77
    %v290 = vunpack.c.h.b16 %v77
    %v291 = vunpack.c.l.b16 %v78
    %v292 = vunpack.c.h.b16 %v78
    %v293 = vunpack.c.l.b16 %v79
    %v294 = vunpack.c.h.b16 %v79
    %v295 = vunpack.c.l.b16 %v80
    %v296 = vunpack.c.h.b16 %v80
    %v297 = vunpack.c.l.b16 %v81
    %v298 = vunpack.c.h.b16 %v81
    %v299 = vunpack.c.l.b16 %v82
    %v300 = vunpack.c.h.b16 %v82
    %v301 = vunpack.c.l.b16 %v83
    %v302 = vunpack.c.h.b16 %v83
    %v303 = vunpack.c.l.b16 %v84
    %v304 = vunpack.c.h.b16 %v84
    %v305 = vunpack.c.l.b16 %v85
    %v306 = vunpack.c.h.b16 %v85
    %v307 = vunpack.c.l.b16 %v86
    %v308 = vunpack.c.h.b16 %v86
    %v309 = vunpack.c.l.b16 %v87
    %v310 = vunpack.c.h.b16 %v87
    %v311 = vunpack.c.l.b16 %v88
    %v312 = vunpack.c.h.b16 %v88
    %v313 = vunpack.c.l.b16 %v89
    %v314 = vunpack.c.h.b16 %v89
    %v315 = vunpack.c.l.b16 %v90
    %v316 = vunpack.c.h.b16 %v90
    %v317 = vunpack.c.l.b16 %v91
    %v318 = vunpack.c.h.b16 %v91
    %v319 = vunpack.c.l.b16 %v92
    %v320 = vunpack.c.h.b16 %v92
    %v321 = vunpack.c.l.b16 %v93
    %v322 = vunpack.c.h.b16 %v93
    %v323 = vunpack.c.l.b16 %v94
    %v324 = vunpack.c.h.b16 %v94
    %v325 = vunpack.c.l.b16 %v95
    %v326 = vunpack.c.h.b16 %v95
    %v327 = vunpack.c.l.b16 %v96
    %v328 = vunpack.c.h.b16 %v96
    %v329 = vunpack.c.l.b16 %v97
    %v330 = vunpack.c.h.b16 %v97
    %v331 = vunpack.c.l.b16 %v98
    %v332 = vunpack.c.h.b16 %v98
    %v333 = vunpack.c.l.b16 %v99
    %v334 = vunpack.c.h.b16 %v99
    %v335 = vunpack.c.l.b16 %v100
    %v336 = vunpack.c.h.b16 %v100
    %v337 = vunpack.c.l.b16 %v101
    %v338 = vunpack.c.h.b16 %v101
    %v339 = vunpack.c.l.b16 %v102
    %v340 = vunpack.c.h.b16 %v102
    %v341 = vunpack.c.l.b16 %v103
    %v342 = vunpack.c.h.b16 %v103
    %v343 = vunpack.c.l.b16 %v104
    %v344 = vunpack.c.h.b16 %v104
    %v345 = vunpack.c.l.b16 %v105
    %v346 = vunpack.c.h.b16 %v105
    %v347 = vunpack.c.l.b16 %v106
    %v348 = vunpack.c.h.b16 %v106
    %v349 = vunpack.c.l.b16 %v107
    %v350 = vunpack.c.h.b16 %v107
    %v351 = vunpack.c.l.b16 %v108
    %v352 = vunpack.c.h.b16 %v108
    %v353 = vunpack.c.l.b16 %v109
    %v354 = vunpack.c.h.b16 %v109
    %v355 = vunpack.c.l.b16 %v110
    %v356 = vunpack.c.h.b16 %v110
    %v357 = vunpack.c.l.b16 %v111
    %v358 = vunpack.c.h.b16 %v111
    %v359 = vunpack.c.l.b16 %v112
    %v360 = vunpack.c.h.b16 %v112
    %v361 = vunpack.c.l.b16 %v113
    %v362 = vunpack.c.h.b16 %v113
    %v363 = vunpack.c.l.b16 %v114
    %v364 = vunpack.c.h.b16 %v114
    %v365 = vunpack.c.l.b16 %v115
    %v366 = vunpack.c.h.b16 %v115
    %v367 = vunpack.c.l.b16 %v116
    %v368 = vunpack.c.h.b16 %v116
    %v369 = vunpack.c.l.b16 %v117
    %v370 = vunpack.c.h.b16 %v117
    %v371 = vunpack.c.l.b16 %v118
    %v372 = vunpack.c.h.b16 %v118
    %v373 = vunpack.c.l.b16 %v119
    %v374 = vunpack.c.h.b16 %v119
    %v375 = vunpack.c.l.b16 %v120
    %v376 = vunpack.c.h.b16 %v120
    %v377 = vunpack.c.l.b16 %v121
    %v378 = vunpack.c.h.b16 %v121
    %v379 = vunpack.c.l.b16 %v122
    %v380 = vunpack.c.h.b16 %v122
    %v381 = vunpack.c.l.b16 %v123
    %v382 = vunpack.c.h.b16 %v123
    %v383 = vunpack.c.l.b16 %v124
    %v384 = vunpack.c.h.b16 %v124
    %v385 = vunpack.c.l.b16 %v125
    %v386 = vunpack.c.h.b16 %v125
    %v387 = vunpack.c.l.b16 %v126
    %v388 = vunpack.c.h.b16 %v126
    %v389 = vunpack.c.l.b16 %v127
    %v390 = vunpack.c.h.b16 %v127
    %v391 = vunpack.c.l.b16 %v128
    %v392 = vunpack.c.h.b16 %v128
    %v393 = vunpack.c.l.b16 %v129
    %v394 = vunpack.c.h.b16 %v129
    %v395 = vunpack.c.l.b16 %v130
    %v396 = vunpack.c.h.b16 %v130
    %v397 = vunpack.c.l.b16 %v131
    %v398 = vunpack.c.h.b16 %v131
    %v399 = vunpack.c.l.b16 %v132
    %v400 = vunpack.c.h.b16 %v132
    %v401 = vunpack.c.l.b16 %v133
    %v402 = vunpack.c.h.b16 %v133
    %v403 = vunpack.c.l.b16 %v134
    %v404 = vunpack.c.h.b16 %v134
    %v405 = vunpack.c.l.b16 %v135
    %v406 = vunpack.c.h.b16 %v135
    %v407 = vunpack.c.l.b16 %v136
    %v408 = vunpack.c.h.b16 %v136
    %v409 = vunpack.c.l.b16 %v137
    %v410 = vunpack.c.h.b16 %v137
    %v411 = vunpack.c.l.b16 %v138
    %v412 = vunpack.c.h.b16 %v138
    %v413 = vunpack.c.l.b16 %v139
    %v414 = vunpack.c.h.b16 %v139
    %v415 = vunpack.c.l.b16 %v140
    %v416 = vunpack.c.h.b16 %v140
    %v417 = vunpack.c.l.b16 %v141
    %v418 = vunpack.c.h.b16 %v141
    %v419 = vunpack.c.l.b16 %v142
    %v420 = vunpack.c.h.b16 %v142
    %v421 = vunpack.c.l.b16 %v143
    %v422 = vunpack.c.h.b16 %v143
    %v423 = vunpack.c.l.b16 %v144
    %v424 = vunpack.c.h.b16 %v144
    %v425 = vunpack.c.l.b16 %v145
    %v426 = vunpack.c.h.b16 %v145
    %v427 = vunpack.c.l.b16 %v146
    %v428 = vunpack.c.h.b16 %v146
    %v429 = vunpack.c.l.b16 %v147
    %v430 = vunpack.c.h.b16 %v147
    %v431 = vunpack.c.l.b16 %v148
    %v432 = vunpack.c.h.b16 %v148
    %v433 = vunpack.c.l.b16 %v149
    %v434 = vunpack.c.h.b16 %v149
    %v435 = vunpack.c.l.b16 %v150
    %v436 = vunpack.c.h.b16 %v150
    %v437 = vunpack.c.l.b16 %v151
    %v438 = vunpack.c.h.b16 %v151
    %v439 = vpack.c.b16 %v283, %v281
    %v440 = vpack.c.b16 %v284, %v282
    %v441 = vpack.c.b16 %v287, %v285
    %v442 = vpack.c.b16 %v288, %v286
    %v443 = vpack.c.b16 %v291, %v289
    %v444 = vpack.c.b16 %v292, %v290
    %v445 = vpack.c.b16 %v295, %v293
    %v446 = vpack.c.b16 %v296, %v294
    %v447 = vpack.c.b16 %v299, %v297
    %v448 = vpack.c.b16 %v300, %v298
    %v449 = vpack.c.b16 %v303, %v301
    %v450 = vpack.c.b16 %v304, %v302
    %v451 = vpack.c.b16 %v307, %v305
    %v452 = vpack.c.b16 %v308, %v306
    %v453 = vpack.c.b16 %v311, %v309
    %v454 = vpack.c.b16 %v312, %v310
    %v455 = vpack.c.b16 %v315, %v313
    %v456 = vpack.c.b16 %v316, %v314
    %v457 = vpack.c.b16 %v319, %v317
    %v458 = vpack.c.b16 %v320, %v318
    %v459 = vpack.c.b16 %v323, %v321
    %v460 = vpack.c.b16 %v324, %v322
    %v461 = vpack.c.b16 %v327, %v325
    %v462 = vpack.c.b16 %v328, %v326
    %v463 = vpack.c.b16 %v331, %v329
    %v464 = vpack.c.b16 %v332, %v330
    %v465 = vpack.c.b16 %v335, %v333
    %v466 = vpack.c.b16 %v336, %v334
    %v467 = vpack.c.b16 %v339, %v337
    %v468 = vpack.c.b16 %v340, %v338
    %v469 = vpack.c.b16 %v343, %v341
    %v470 = vpack.c.b16 %v344, %v342
    %v471 = vpack.c.b16 %v347, %v345
    %v472 = vpack.c.b16 %v348, %v346
    %v473 = vpack.c.b16 %v351, %v349
    %v474 = vpack.c.b16 %v352, %v350
    %v475 = vpack.c.b16 %v355, %v353
    %v476 = vpack.c.b16 %v356, %v354
    %v477 = vpack.c.b16 %v359, %v357
    %v478 = vpack.c.b16 %v360, %v358
    %v479 = vpack.c.b16 %v363, %v361
    %v480 = vpack.c.b16 %v364, %v362
    %v481 = vpack.c.b16 %v367, %v365
    %v482 = vpack.c.b16 %v368, %v366
    %v483 = vpack.c.b16 %v371, %v369
    %v484 = vpack.c.b16 %v372, %v370
    %v485 = vpack.c.b16 %v375, %v373
    %v486 = vpack.c.b16 %v376, %v374
    %v487 = vpack.c.b16 %v379, %v377
    %v488 = vpack.c.b16 %v380, %v378
    %v489 = vpack.c.b16 %v383, %v381
    %v490 = vpack.c.b16 %v384, %v382
    %v491 = vpack.c.b16 %v387, %v385
    %v492 = vpack.c.b16 %v388, %v386
    %v493 = vpack.c.b16 %v391, %v389
    %v494 = vpack.c.b16 %v392, %v390
    %v495 = vpack.c.b16 %v395, %v393
    %v496 = vpack.c.b16 %v396, %v394
    %v497 = vpack.c.b16 %v399, %v397
    %v498 = vpack.c.b16 %v400, %v398
    %v499 = vpack.c.b16 %v403, %v401
    %v500 = vpack.c.b16 %v404, %v402
    %v501 = vpack.c.b16 %v407, %v405
    %v502 = vpack.c.b16 %v408, %v406
    %v503 = vpack.c.b16 %v411, %v409
    %v504 = vpack.c.b16 %v412, %v410
    %v505 = vpack.c.b16 %v415, %v413
    %v506 = vpack.c.b16 %v416, %v414
    %v507 = vpack.c.b16 %v419, %v417
    %v508 = vpack.c.b16 %v420, %v418
    %v509 = vpack.c.b16 %v423, %v421
    %v510 = vpack.c.b16 %v424, %v422
    %v511 = vpack.c.b16 %v427, %v425
    %v512 = vpack.c.b16 %v428, %v426
    %v513 = vpack.c.b16 %v431, %v429
    %v514 = vpack.c.b16 %v432, %v430
    %v515 = vpack.c.b16 %v435, %v433
    %v516 = vpack.c.b16 %v436, %v434
    %v517 = vpack.c.b16 %v437, %v437
    %v518 = vpack.c.b16 %v438, %v438
    %vm597 = vcmask 924672
    %v599 = vsel %vm597, %v188, 0
    %v602 = vsel %vm597, %v193, 0
    %vm604 = vcmask 1040384
    %v605 = vsel 0, 4294967295, 65535
    %v606 = vsel %vm604, %v605, 0
    %v608 = vand.u32 %v517, %v606
    %v611 = vand.u32 %v518, %v606
    %613 = vmatprep.subr.bf16.mxu0 %v440
    %614 = vmatpush1.bf16.msra.mxu0 %v439
    %615 = vmatprep.subr.bf16.mxu0 %v442
    %616 = vmatpush1.bf16.msra.mxu0 %v441
    %617 = vmatprep.subr.bf16.mxu0 %v444
    %618 = vmatpush1.bf16.msra.mxu0 %v443
    %619 = vmatprep.subr.bf16.mxu0 %v446
    %620 = vmatpush1.bf16.msra.mxu0 %v445
    %621 = vmatprep.subr.bf16.mxu0 %v448
    %622 = vmatpush1.bf16.msra.mxu0 %v447
    %623 = vmatprep.subr.bf16.mxu0 %v450
    %624 = vmatpush1.bf16.msra.mxu0 %v449
    %625 = vmatprep.subr.bf16.mxu0 %v452
    %626 = vmatpush1.bf16.msra.mxu0 %v451
    %627 = vmatprep.subr.bf16.mxu0 %v454
    %628 = vmatpush1.bf16.msra.mxu0 %v453
    %629 = vmatprep.subr.bf16.mxu0 %v456
    %630 = vmatpush1.bf16.msra.mxu0 %v455
    %631 = vmatprep.subr.bf16.mxu0 %v458
    %632 = vmatpush1.bf16.msra.mxu0 %v457
    %633 = vmatprep.subr.bf16.mxu0 %v460
    %634 = vmatpush1.bf16.msra.mxu0 %v459
    %635 = vmatprep.subr.bf16.mxu0 %v462
    %636 = vmatpush1.bf16.msra.mxu0 %v461
    %637 = vmatprep.subr.bf16.mxu0 %v464
    %638 = vmatpush1.bf16.msra.mxu0 %v463
    %639 = vmatprep.subr.bf16.mxu0 %v466
    %640 = vmatpush1.bf16.msra.mxu0 %v465
    %641 = vmatprep.subr.bf16.mxu0 %v468
    %642 = vmatpush1.bf16.msra.mxu0 %v467
    %643 = vmatprep.subr.bf16.mxu0 %v470
    %644 = vmatpush1.bf16.msra.mxu0 %v469
    %645 = vmatprep.mubr.bf16.mxu0 %v185
    %646 = vmatmul.mubr.bf16.gmra.mrb[0].mxu0 %v184
    %v647 = vpop.f32.mrb[0].mxu0
    %v648 = vadd.f32 0.0, %v647
    %v649 = vpop.f32.mrb[0].mxu0
    %v650 = vadd.f32 0.0, %v649
    %v651 = vpop.f32.mrb[0].mxu0
    %v652 = vadd.f32 0.0, %v651
    %v653 = vpop.f32.mrb[0].mxu0
    %v654 = vadd.f32 0.0, %v653
    %655 = vmatprep.mubr.bf16.mxu0 %v190
    %656 = vmatmul.mubr.bf16.gmra.mrb[0].mxu0 %v189
    %v657 = vpop.f32.mrb[0].mxu0
    %v658 = vadd.f32 0.0, %v657
    %v659 = vpop.f32.mrb[0].mxu0
    %v660 = vadd.f32 0.0, %v659
    %v661 = vpop.f32.mrb[0].mxu0
    %v662 = vadd.f32 0.0, %v661
    %v663 = vpop.f32.mrb[0].mxu0
    %v664 = vadd.f32 0.0, %v663
    %665 = vdwg.mxu0
    %666 = vmatprep.subr.bf16.mxu0 %v472
    %667 = vmatpush1.bf16.msra.mxu0 %v471
    %668 = vmatprep.subr.bf16.mxu0 %v474
    %669 = vmatpush1.bf16.msra.mxu0 %v473
    %670 = vmatprep.subr.bf16.mxu0 %v476
    %671 = vmatpush1.bf16.msra.mxu0 %v475
    %672 = vmatprep.subr.bf16.mxu0 %v478
    %673 = vmatpush1.bf16.msra.mxu0 %v477
    %674 = vmatprep.subr.bf16.mxu0 %v480
    %675 = vmatpush1.bf16.msra.mxu0 %v479
    %676 = vmatprep.subr.bf16.mxu0 %v482
    %677 = vmatpush1.bf16.msra.mxu0 %v481
    %678 = vmatprep.subr.bf16.mxu0 %v484
    %679 = vmatpush1.bf16.msra.mxu0 %v483
    %680 = vmatprep.subr.bf16.mxu0 %v486
    %681 = vmatpush1.bf16.msra.mxu0 %v485
    %682 = vmatprep.subr.bf16.mxu0 %v488
    %683 = vmatpush1.bf16.msra.mxu0 %v487
    %684 = vmatprep.subr.bf16.mxu0 %v490
    %685 = vmatpush1.bf16.msra.mxu0 %v489
    %686 = vmatprep.subr.bf16.mxu0 %v492
    %687 = vmatpush1.bf16.msra.mxu0 %v491
    %688 = vmatprep.subr.bf16.mxu0 %v494
    %689 = vmatpush1.bf16.msra.mxu0 %v493
    %690 = vmatprep.subr.bf16.mxu0 %v496
    %691 = vmatpush1.bf16.msra.mxu0 %v495
    %692 = vmatprep.subr.bf16.mxu0 %v498
    %693 = vmatpush1.bf16.msra.mxu0 %v497
    %694 = vmatprep.subr.bf16.mxu0 %v500
    %695 = vmatpush1.bf16.msra.mxu0 %v499
    %696 = vmatprep.subr.bf16.mxu0 %v502
    %697 = vmatpush1.bf16.msra.mxu0 %v501
    %698 = vmatprep.mubr.bf16.mxu0 %v187
    %699 = vmatmul.mubr.bf16.gmra.mrb[0].mxu0 %v186
    %v700 = vpop.f32.mrb[0].mxu0
    %v701 = vadd.f32 %v648, %v700
    %v702 = vpop.f32.mrb[0].mxu0
    %v703 = vadd.f32 %v650, %v702
    %v704 = vpop.f32.mrb[0].mxu0
    %v705 = vadd.f32 %v652, %v704
    %v706 = vpop.f32.mrb[0].mxu0
    %v707 = vadd.f32 %v654, %v706
    %708 = vmatprep.mubr.bf16.mxu0 %v192
    %709 = vmatmul.mubr.bf16.gmra.mrb[0].mxu0 %v191
    %v710 = vpop.f32.mrb[0].mxu0
    %v711 = vadd.f32 %v658, %v710
    %v712 = vpop.f32.mrb[0].mxu0
    %v713 = vadd.f32 %v660, %v712
    %v714 = vpop.f32.mrb[0].mxu0
    %v715 = vadd.f32 %v662, %v714
    %v716 = vpop.f32.mrb[0].mxu0
    %v717 = vadd.f32 %v664, %v716
    %718 = vdwg.mxu0
    %719 = vmatprep.subr.bf16.mxu0 %v504
    %720 = vmatpush1.bf16.msra.mxu0 %v503
    %721 = vmatprep.subr.bf16.mxu0 %v506
    %722 = vmatpush1.bf16.msra.mxu0 %v505
    %723 = vmatprep.subr.bf16.mxu0 %v508
    %724 = vmatpush1.bf16.msra.mxu0 %v507
    %725 = vmatprep.subr.bf16.mxu0 %v510
    %726 = vmatpush1.bf16.msra.mxu0 %v509
    %727 = vmatprep.subr.bf16.mxu0 %v512
    %728 = vmatpush1.bf16.msra.mxu0 %v511
    %729 = vmatprep.subr.bf16.mxu0 %v514
    %730 = vmatpush1.bf16.msra.mxu0 %v513
    %731 = vmatprep.subr.bf16.mxu0 %v516
    %732 = vmatpush1.bf16.msra.mxu0 %v515
    %733 = vmatprep.subr.bf16.mxu0 %v611
    %734 = vmatpush1.bf16.msra.mxu0 %v608
    %735 = vmatprep.subr.bf16.mxu0 0
    %736 = vmatpush1.bf16.msra.mxu0 0
    %737 = vmatprep.subr.bf16.mxu0 0
    %738 = vmatpush1.bf16.msra.mxu0 0
    %739 = vmatprep.subr.bf16.mxu0 0
    %740 = vmatpush1.bf16.msra.mxu0 0
    %741 = vmatprep.subr.bf16.mxu0 0
    %742 = vmatpush1.bf16.msra.mxu0 0
    %743 = vmatprep.subr.bf16.mxu0 0
    %744 = vmatpush1.bf16.msra.mxu0 0
    %745 = vmatprep.subr.bf16.mxu0 0
    %746 = vmatpush1.bf16.msra.mxu0 0
    %747 = vmatprep.subr.bf16.mxu0 0
    %748 = vmatpush1.bf16.msra.mxu0 0
    %749 = vmatprep.subr.bf16.mxu0 0
    %750 = vmatpush1.bf16.msra.mxu0 0
    %751 = vmatprep.mubr.bf16.mxu0 0
    %752 = vmatmul.mubr.bf16.gmra.mrb[0].mxu0 %v599
    %v753 = vpop.f32.mrb[0].mxu0
    %v754 = vadd.f32 %v701, %v753
    %v755 = vpop.f32.mrb[0].mxu0
    %v756 = vadd.f32 %v703, %v755
    %v757 = vpop.f32.mrb[0].mxu0
    %v758 = vadd.f32 %v705, %v757
    %v759 = vpop.f32.mrb[0].mxu0
    %v760 = vadd.f32 %v707, %v759
    %761 = vmatprep.mubr.bf16.mxu0 0
    %762 = vmatmul.mubr.bf16.gmra.mrb[0].mxu0 %v602
    %v763 = vpop.f32.mrb[0].mxu0
    %v764 = vadd.f32 %v711, %v763
    %v765 = vpop.f32.mrb[0].mxu0
    %v766 = vadd.f32 %v713, %v765
    %v767 = vpop.f32.mrb[0].mxu0
    %v768 = vadd.f32 %v715, %v767
    %v769 = vpop.f32.mrb[0].mxu0
    %v770 = vadd.f32 %v717, %v769
    %771 = vdwg.mxu0
    %v784 = vunpack.c.l.b16 %v37
    %v785 = vunpack.c.h.b16 %v37
    %v786 = vunpack.c.l.b16 %v38
    %v787 = vunpack.c.h.b16 %v38
    %v788 = vunpack.c.l.b16 %v39
    %v789 = vunpack.c.l.b16 %v40
    %v790 = vunpack.c.h.b16 %v40
    %v791 = vunpack.c.l.b16 %v41
    %v792 = vunpack.c.h.b16 %v41
    %v793 = vunpack.c.l.b16 %v42
    %v794 = vunpack.c.l.b16 %v43
    %v795 = vunpack.c.h.b16 %v43
    %v796 = vunpack.c.l.b16 %v44
    %v797 = vunpack.c.h.b16 %v44
    %v798 = vunpack.c.l.b16 %v45
    %v799 = vunpack.c.l.b16 %v46
    %v800 = vunpack.c.h.b16 %v46
    %v801 = vunpack.c.l.b16 %v47
    %v802 = vunpack.c.h.b16 %v47
    %v803 = vunpack.c.l.b16 %v48
    %v804 = vpack.c.b16 %v789, %v784
    %v805 = vpack.c.b16 %v790, %v785
    %v806 = vpack.c.b16 %v791, %v786
    %v807 = vpack.c.b16 %v792, %v787
    %v808 = vpack.c.b16 %v793, %v788
    %v809 = vpack.c.b16 %v799, %v794
    %v810 = vpack.c.b16 %v800, %v795
    %v811 = vpack.c.b16 %v801, %v796
    %v812 = vpack.c.b16 %v802, %v797
    %v813 = vpack.c.b16 %v803, %v798
    %v823 = vsel %vm597, %v808, 0
    %v826 = vsel %vm597, %v813, 0
    %828 = vmatprep.subr.bf16.mxu0 %v440
    %829 = vmatpush1.bf16.msra.mxu0 %v439
    %830 = vmatprep.subr.bf16.mxu0 %v442
    %831 = vmatpush1.bf16.msra.mxu0 %v441
    %832 = vmatprep.subr.bf16.mxu0 %v444
    %833 = vmatpush1.bf16.msra.mxu0 %v443
    %834 = vmatprep.subr.bf16.mxu0 %v446
    %835 = vmatpush1.bf16.msra.mxu0 %v445
    %836 = vmatprep.subr.bf16.mxu0 %v448
    %837 = vmatpush1.bf16.msra.mxu0 %v447
    %838 = vmatprep.subr.bf16.mxu0 %v450
    %839 = vmatpush1.bf16.msra.mxu0 %v449
    %840 = vmatprep.subr.bf16.mxu0 %v452
    %841 = vmatpush1.bf16.msra.mxu0 %v451
    %842 = vmatprep.subr.bf16.mxu0 %v454
    %843 = vmatpush1.bf16.msra.mxu0 %v453
    %844 = vmatprep.subr.bf16.mxu0 %v456
    %845 = vmatpush1.bf16.msra.mxu0 %v455
    %846 = vmatprep.subr.bf16.mxu0 %v458
    %847 = vmatpush1.bf16.msra.mxu0 %v457
    %848 = vmatprep.subr.bf16.mxu0 %v460
    %849 = vmatpush1.bf16.msra.mxu0 %v459
    %850 = vmatprep.subr.bf16.mxu0 %v462
    %851 = vmatpush1.bf16.msra.mxu0 %v461
    %852 = vmatprep.subr.bf16.mxu0 %v464
    %853 = vmatpush1.bf16.msra.mxu0 %v463
    %854 = vmatprep.subr.bf16.mxu0 %v466
    %855 = vmatpush1.bf16.msra.mxu0 %v465
    %856 = vmatprep.subr.bf16.mxu0 %v468
    %857 = vmatpush1.bf16.msra.mxu0 %v467
    %858 = vmatprep.subr.bf16.mxu0 %v470
    %859 = vmatpush1.bf16.msra.mxu0 %v469
    %860 = vmatprep.mubr.bf16.mxu0 %v805
    %861 = vmatmul.mubr.bf16.gmra.mrb[0].mxu0 %v804
    %v862 = vpop.f32.mrb[0].mxu0
    %v863 = vadd.f32 0.0, %v862
    %v864 = vpop.f32.mrb[0].mxu0
    %v865 = vadd.f32 0.0, %v864
    %v866 = vpop.f32.mrb[0].mxu0
    %v867 = vadd.f32 0.0, %v866
    %v868 = vpop.f32.mrb[0].mxu0
    %v869 = vadd.f32 0.0, %v868
    %870 = vmatprep.mubr.bf16.mxu0 %v810
    %871 = vmatmul.mubr.bf16.gmra.mrb[0].mxu0 %v809
    %v872 = vpop.f32.mrb[0].mxu0
    %v873 = vadd.f32 0.0, %v872
    %v874 = vpop.f32.mrb[0].mxu0
    %v875 = vadd.f32 0.0, %v874
    %v876 = vpop.f32.mrb[0].mxu0
    %v877 = vadd.f32 0.0, %v876
    %v878 = vpop.f32.mrb[0].mxu0
    %v879 = vadd.f32 0.0, %v878
    %880 = vdwg.mxu0
    %881 = vmatprep.subr.bf16.mxu0 %v472
    %882 = vmatpush1.bf16.msra.mxu0 %v471
    %883 = vmatprep.subr.bf16.mxu0 %v474
    %884 = vmatpush1.bf16.msra.mxu0 %v473
    %885 = vmatprep.subr.bf16.mxu0 %v476
    %886 = vmatpush1.bf16.msra.mxu0 %v475
    %887 = vmatprep.subr.bf16.mxu0 %v478
    %888 = vmatpush1.bf16.msra.mxu0 %v477
    %889 = vmatprep.subr.bf16.mxu0 %v480
    %890 = vmatpush1.bf16.msra.mxu0 %v479
    %891 = vmatprep.subr.bf16.mxu0 %v482
    %892 = vmatpush1.bf16.msra.mxu0 %v481
    %893 = vmatprep.subr.bf16.mxu0 %v484
    %894 = vmatpush1.bf16.msra.mxu0 %v483
    %895 = vmatprep.subr.bf16.mxu0 %v486
    %896 = vmatpush1.bf16.msra.mxu0 %v485
    %897 = vmatprep.subr.bf16.mxu0 %v488
    %898 = vmatpush1.bf16.msra.mxu0 %v487
    %899 = vmatprep.subr.bf16.mxu0 %v490
    %900 = vmatpush1.bf16.msra.mxu0 %v489
    %901 = vmatprep.subr.bf16.mxu0 %v492
    %902 = vmatpush1.bf16.msra.mxu0 %v491
    %903 = vmatprep.subr.bf16.mxu0 %v494
    %904 = vmatpush1.bf16.msra.mxu0 %v493
    %905 = vmatprep.subr.bf16.mxu0 %v496
    %906 = vmatpush1.bf16.msra.mxu0 %v495
    %907 = vmatprep.subr.bf16.mxu0 %v498
    %908 = vmatpush1.bf16.msra.mxu0 %v497
    %909 = vmatprep.subr.bf16.mxu0 %v500
    %910 = vmatpush1.bf16.msra.mxu0 %v499
    %911 = vmatprep.subr.bf16.mxu0 %v502
    %912 = vmatpush1.bf16.msra.mxu0 %v501
    %913 = vmatprep.mubr.bf16.mxu0 %v807
    %914 = vmatmul.mubr.bf16.gmra.mrb[0].mxu0 %v806
    %v915 = vpop.f32.mrb[0].mxu0
    %v916 = vadd.f32 %v863, %v915
    %v917 = vpop.f32.mrb[0].mxu0
    %v918 = vadd.f32 %v865, %v917
    %v919 = vpop.f32.mrb[0].mxu0
    %v920 = vadd.f32 %v867, %v919
    %v921 = vpop.f32.mrb[0].mxu0
    %v922 = vadd.f32 %v869, %v921
    %923 = vmatprep.mubr.bf16.mxu0 %v812
    %924 = vmatmul.mubr.bf16.gmra.mrb[0].mxu0 %v811
    %v925 = vpop.f32.mrb[0].mxu0
    %v926 = vadd.f32 %v873, %v925
    %v927 = vpop.f32.mrb[0].mxu0
    %v928 = vadd.f32 %v875, %v927
    %v929 = vpop.f32.mrb[0].mxu0
    %v930 = vadd.f32 %v877, %v929
    %v931 = vpop.f32.mrb[0].mxu0
    %v932 = vadd.f32 %v879, %v931
    %933 = vdwg.mxu0
    %934 = vmatprep.subr.bf16.mxu0 %v504
    %935 = vmatpush1.bf16.msra.mxu0 %v503
    %936 = vmatprep.subr.bf16.mxu0 %v506
    %937 = vmatpush1.bf16.msra.mxu0 %v505
    %938 = vmatprep.subr.bf16.mxu0 %v508
    %939 = vmatpush1.bf16.msra.mxu0 %v507
    %940 = vmatprep.subr.bf16.mxu0 %v510
    %941 = vmatpush1.bf16.msra.mxu0 %v509
    %942 = vmatprep.subr.bf16.mxu0 %v512
    %943 = vmatpush1.bf16.msra.mxu0 %v511
    %944 = vmatprep.subr.bf16.mxu0 %v514
    %945 = vmatpush1.bf16.msra.mxu0 %v513
    %946 = vmatprep.subr.bf16.mxu0 %v516
    %947 = vmatpush1.bf16.msra.mxu0 %v515
    %948 = vmatprep.subr.bf16.mxu0 %v611
    %949 = vmatpush1.bf16.msra.mxu0 %v608
    %950 = vmatprep.subr.bf16.mxu0 0
    %951 = vmatpush1.bf16.msra.mxu0 0
    %952 = vmatprep.subr.bf16.mxu0 0
    %953 = vmatpush1.bf16.msra.mxu0 0
    %954 = vmatprep.subr.bf16.mxu0 0
    %955 = vmatpush1.bf16.msra.mxu0 0
    %956 = vmatprep.subr.bf16.mxu0 0
    %957 = vmatpush1.bf16.msra.mxu0 0
    %958 = vmatprep.subr.bf16.mxu0 0
    %959 = vmatpush1.bf16.msra.mxu0 0
    %960 = vmatprep.subr.bf16.mxu0 0
    %961 = vmatpush1.bf16.msra.mxu0 0
    %962 = vmatprep.subr.bf16.mxu0 0
    %963 = vmatpush1.bf16.msra.mxu0 0
    %964 = vmatprep.subr.bf16.mxu0 0
    %965 = vmatpush1.bf16.msra.mxu0 0
    %966 = vmatprep.mubr.bf16.mxu0 0
    %967 = vmatmul.mubr.bf16.gmra.mrb[0].mxu0 %v823
    %v968 = vpop.f32.mrb[0].mxu0
    %v969 = vadd.f32 %v916, %v968
    %v970 = vpop.f32.mrb[0].mxu0
    %v971 = vadd.f32 %v918, %v970
    %v972 = vpop.f32.mrb[0].mxu0
    %v973 = vadd.f32 %v920, %v972
    %v974 = vpop.f32.mrb[0].mxu0
    %v975 = vadd.f32 %v922, %v974
    %976 = vmatprep.mubr.bf16.mxu0 0
    %977 = vmatmul.mubr.bf16.gmra.mrb[0].mxu0 %v826
    %v978 = vpop.f32.mrb[0].mxu0
    %v979 = vadd.f32 %v926, %v978
    %v980 = vpop.f32.mrb[0].mxu0
    %v981 = vadd.f32 %v928, %v980
    %v982 = vpop.f32.mrb[0].mxu0
    %v983 = vadd.f32 %v930, %v982
    %v984 = vpop.f32.mrb[0].mxu0
    %v985 = vadd.f32 %v932, %v984
    %986 = vdwg.mxu0
    %v987 = vsub.f32 %v969, %v754
    %v988 = vsub.f32 %v971, %v756
    %v989 = vsub.f32 %v973, %v758
    %v990 = vsub.f32 %v975, %v760
    %v991 = vsub.f32 %v979, %v764
    %v992 = vsub.f32 %v981, %v766
    %v993 = vsub.f32 %v983, %v768
    %v994 = vsub.f32 %v985, %v770
    %v995 = vld [vmem:[%s3] sm:$0x3]
    %v996 = vand.u32 2147483647, %v754
    %v997 = vand.u32 2147483647, %v756
    %v998 = vand.u32 2147483647, %v758
    %v999 = vand.u32 2147483647, %v760
    %v1000 = vand.u32 2147483647, %v764
    %v1001 = vand.u32 2147483647, %v766
    %v1002 = vand.u32 2147483647, %v768
    %v1003 = vand.u32 2147483647, %v770
    %v1004 = vadd.f32 %v996, 1e-20
    %v1005 = vadd.f32 %v997, 1e-20
    %v1006 = vadd.f32 %v998, 1e-20
    %v1007 = vadd.f32 %v999, 1e-20
    %v1008 = vadd.f32 %v1000, 1e-20
    %v1009 = vadd.f32 %v1001, 1e-20
    %v1010 = vadd.f32 %v1002, 1e-20
    %v1011 = vadd.f32 %v1003, 1e-20
    %v1012 = vand.u32 2147483647, %v987
    %v1013 = vand.u32 2147483647, %v988
    %v1014 = vand.u32 2147483647, %v989
    %v1015 = vand.u32 2147483647, %v990
    %v1016 = vand.u32 2147483647, %v991
    %v1017 = vand.u32 2147483647, %v992
    %v1018 = vand.u32 2147483647, %v993
    %v1019 = vand.u32 2147483647, %v994
    %v1020 = vadd.f32 %v1012, 1e-20
    %v1021 = vadd.f32 %v1013, 1e-20
    %v1022 = vadd.f32 %v1014, 1e-20
    %v1023 = vadd.f32 %v1015, 1e-20
    %v1024 = vadd.f32 %v1016, 1e-20
    %v1025 = vadd.f32 %v1017, 1e-20
    %v1026 = vadd.f32 %v1018, 1e-20
    %v1027 = vadd.f32 %v1019, 1e-20
    %v1028 = vadd.f32 %v1004, %v1020
    %v1029 = vadd.f32 %v1005, %v1021
    %v1030 = vadd.f32 %v1006, %v1022
    %v1031 = vadd.f32 %v1007, %v1023
    %v1032 = vadd.f32 %v1008, %v1024
    %v1033 = vadd.f32 %v1009, %v1025
    %v1034 = vadd.f32 %v1010, %v1026
    %v1035 = vadd.f32 %v1011, %v1027
    %v1036 = vrcp.pop %v1028
    %v1037 = vmul.f32 1.0, %v1036
    %v1038 = vrcp.pop %v1029
    %v1039 = vmul.f32 1.0, %v1038
    %v1040 = vrcp.pop %v1030
    %v1041 = vmul.f32 1.0, %v1040
    %v1042 = vrcp.pop %v1031
    %v1043 = vmul.f32 1.0, %v1042
    %v1044 = vrcp.pop %v1032
    %v1045 = vmul.f32 1.0, %v1044
    %v1046 = vrcp.pop %v1033
    %v1047 = vmul.f32 1.0, %v1046
    %v1048 = vrcp.pop %v1034
    %v1049 = vmul.f32 1.0, %v1048
    %v1050 = vrcp.pop %v1035
    %v1051 = vmul.f32 1.0, %v1050
    %v1052 = vmul.f32 %v1004, %v1037
    %v1053 = vmul.f32 %v1005, %v1039
    %v1054 = vmul.f32 %v1006, %v1041
    %v1055 = vmul.f32 %v1007, %v1043
    %v1056 = vmul.f32 %v1008, %v1045
    %v1057 = vmul.f32 %v1009, %v1047
    %v1058 = vmul.f32 %v1010, %v1049
    %v1059 = vmul.f32 %v1011, %v1051
    %v1061 = vlaneseq
    %v1062 = vshrl.u32 %v1061, 7
    %v1063 = vsub.s32 0, %v1062
    %v1064 = vrot.slane %v995, %v1063
    %v1065 = vlaneseq
    %v1066 = vshrl.u32 %v1065, 7
    %v1067 = vsub.s32 1, %v1066
    %v1068 = vrot.slane %v995, %v1067
    %v1071 = vmul.f32 %v1052, %v1064
    %v1072 = vmul.f32 %v1053, %v1068
    %v1073 = vmul.f32 %v1054, %v1064
    %v1074 = vmul.f32 %v1055, %v1068
    %v1075 = vmul.f32 %v1056, %v1064
    %v1076 = vmul.f32 %v1057, %v1068
    %v1077 = vmul.f32 %v1058, %v1064
    %v1078 = vmul.f32 %v1059, %v1068
    %v1079 = vadd.f32 %v754, %v1071
    %v1080 = vadd.f32 %v756, %v1072
    %v1081 = vadd.f32 %v758, %v1073
    %v1082 = vadd.f32 %v760, %v1074
    %v1083 = vadd.f32 %v764, %v1075
    %v1084 = vadd.f32 %v766, %v1076
    %v1085 = vadd.f32 %v768, %v1077
    %v1086 = vadd.f32 %v770, %v1078
    %v1087 = vmul.f32 %v1020, %v1037
    %v1088 = vmul.f32 %v1021, %v1039
    %v1089 = vmul.f32 %v1022, %v1041
    %v1090 = vmul.f32 %v1023, %v1043
    %v1091 = vmul.f32 %v1024, %v1045
    %v1092 = vmul.f32 %v1025, %v1047
    %v1093 = vmul.f32 %v1026, %v1049
    %v1094 = vmul.f32 %v1027, %v1051
    %v1095 = vmul.f32 %v1087, %v1064
    %v1096 = vmul.f32 %v1088, %v1068
    %v1097 = vmul.f32 %v1089, %v1064
    %v1098 = vmul.f32 %v1090, %v1068
    %v1099 = vmul.f32 %v1091, %v1064
    %v1100 = vmul.f32 %v1092, %v1068
    %v1101 = vmul.f32 %v1093, %v1064
    %v1102 = vmul.f32 %v1094, %v1068
    %v1103 = vadd.f32 %v987, %v1095
    %v1104 = vadd.f32 %v988, %v1096
    %v1105 = vadd.f32 %v989, %v1097
    %v1106 = vadd.f32 %v990, %v1098
    %v1107 = vadd.f32 %v991, %v1099
    %v1108 = vadd.f32 %v992, %v1100
    %v1109 = vadd.f32 %v993, %v1101
    %v1110 = vadd.f32 %v994, %v1102
    %v1111 = vadd.f32 %v1079, %v1103
    %v1112 = vadd.f32 %v1080, %v1104
    %v1113 = vadd.f32 %v1081, %v1105
    %v1114 = vadd.f32 %v1082, %v1106
    %vm1115 = vcmp.gt.f32.partialorder %v1113, %v1111
    %vm1116 = vcmp.gt.f32.partialorder %v1114, %v1112
    %v1117 = vsel %vm1115, %v1113, %v1111
    %v1118 = vsel %vm1116, %v1114, %v1112
    %v1119 = vsel %vm1115, %v1081, %v1079
    %v1120 = vsel %vm1116, %v1082, %v1080
    %v1121 = vsel %vm1115, %v1105, %v1103
    %v1122 = vsel %vm1116, %v1106, %v1104
    %v1123 = vadd.f32 %v1083, %v1107
    %v1124 = vadd.f32 %v1084, %v1108
    %vm1125 = vcmp.gt.f32.partialorder %v1123, %v1117
    %vm1126 = vcmp.gt.f32.partialorder %v1124, %v1118
    %v1127 = vsel %vm1125, %v1123, %v1117
    %v1128 = vsel %vm1126, %v1124, %v1118
    %v1129 = vsel %vm1125, %v1083, %v1119
    %v1130 = vsel %vm1126, %v1084, %v1120
    %v1131 = vsel %vm1125, %v1107, %v1121
    %v1132 = vsel %vm1126, %v1108, %v1122
    %v1133 = vadd.f32 %v1085, %v1109
    %v1134 = vadd.f32 %v1086, %v1110
    %vm1135 = vcmp.gt.f32.partialorder %v1133, %v1127
    %vm1136 = vcmp.gt.f32.partialorder %v1134, %v1128
    %v1137 = vsel %vm1135, %v1085, %v1129
    %v1138 = vsel %vm1136, %v1086, %v1130
    %v1139 = vsel %vm1135, %v1109, %v1131
    %v1140 = vsel %vm1136, %v1110, %v1132
    %v1141 = vmax.f32 %v1137, 0.0
    %v1142 = vmax.f32 %v1138, 0.0
    %v1143 = vadd.f32 %v1137, %v1139
    %v1144 = vadd.f32 %v1138, %v1140
    %v1145 = vmax.f32 %v1143, 0.0
    %v1146 = vmax.f32 %v1144, 0.0
    %v1147 = vsub.f32 %v1145, %v1141
    %v1148 = vsub.f32 %v1146, %v1142
    %v1149 = vld [vmem:[%s4] sm:$0xff]
    %v1150 = vld [vmem:[%s4 + $0x8] sm:$0xff]
    %v1151 = vld [vmem:[%s4 + $0x10] sm:$0xff]
    %v1152 = vld [vmem:[%s4 + $0x18] sm:$0xff]
    %v1153 = vld [vmem:[%s4 + $0x20] sm:$0xff]
    %v1154 = vld [vmem:[%s4 + $0x28] sm:$0xff]
    %v1155 = vld [vmem:[%s4 + $0x30] sm:$0xff]
    %v1156 = vld [vmem:[%s4 + $0x38] sm:$0xff]
    %v1157 = vld [vmem:[%s4 + $0x40] sm:$0xff]
    %v1158 = vld [vmem:[%s4 + $0x48] sm:$0xff]
    %v1159 = vld [vmem:[%s4 + $0x50] sm:$0xff]
    %v1160 = vld [vmem:[%s4 + $0x58] sm:$0xff]
    %v1161 = vld [vmem:[%s4 + $0x60] sm:$0xff]
    %v1162 = vld [vmem:[%s4 + $0x68] sm:$0xff]
    %v1163 = vld [vmem:[%s4 + $0x70] sm:$0xff]
    %v1164 = vld [vmem:[%s4 + $0x78] sm:$0xff]
    %v1165 = vld [vmem:[%s4 + $0x80] sm:$0xff]
    %v1166 = vld [vmem:[%s4 + $0x88] sm:$0xff]
    %v1167 = vld [vmem:[%s4 + $0x90] sm:$0xff]
    %v1168 = vld [vmem:[%s4 + $0x98] sm:$0xff]
    %v1169 = vld [vmem:[%s4 + $0xa0] sm:$0xff]
    %v1170 = vld [vmem:[%s4 + $0xa8] sm:$0xff]
    %v1171 = vld [vmem:[%s4 + $0xb0] sm:$0xff]
    %v1172 = vld [vmem:[%s4 + $0xb8] sm:$0xff]
    %v1173 = vld [vmem:[%s4 + $0xc0] sm:$0xff]
    %vm1174 = vcmask 588800
    %v1176 = vsel %vm1174, %v1142, 0
    %1178 = vmatprep.subr.mxu0 0.0
    %1179 = vmatpush1.msra.mxu0 %v1149
    %1180 = vmatprep.subr.mxu0 0.0
    %1181 = vmatpush1.msra.mxu0 %v1150
    %1182 = vmatprep.subr.mxu0 0.0
    %1183 = vmatpush1.msra.mxu0 %v1151
    %1184 = vmatprep.subr.mxu0 0.0
    %1185 = vmatpush1.msra.mxu0 %v1152
    %1186 = vmatprep.subr.mxu0 0.0
    %1187 = vmatpush1.msra.mxu0 %v1153
    %1188 = vmatprep.subr.mxu0 0.0
    %1189 = vmatpush1.msra.mxu0 %v1154
    %1190 = vmatprep.subr.mxu0 0.0
    %1191 = vmatpush1.msra.mxu0 %v1155
    %1192 = vmatprep.subr.mxu0 0.0
    %1193 = vmatpush1.msra.mxu0 %v1156
    %1194 = vmatprep.subr.mxu0 0.0
    %1195 = vmatpush1.msra.mxu0 %v1157
    %1196 = vmatprep.subr.mxu0 0.0
    %1197 = vmatpush1.msra.mxu0 %v1158
    %1198 = vmatprep.subr.mxu0 0.0
    %1199 = vmatpush1.msra.mxu0 %v1159
    %1200 = vmatprep.subr.mxu0 0.0
    %1201 = vmatpush1.msra.mxu0 %v1160
    %1202 = vmatprep.subr.mxu0 0.0
    %1203 = vmatpush1.msra.mxu0 %v1161
    %1204 = vmatprep.subr.mxu0 0.0
    %1205 = vmatpush1.msra.mxu0 %v1162
    %1206 = vmatprep.subr.mxu0 0.0
    %1207 = vmatpush1.msra.mxu0 %v1163
    %1208 = vmatprep.subr.mxu0 0.0
    %1209 = vmatpush1.msra.mxu0 %v1164
    %1210 = vmatprep.subr.mxu0 0.0
    %1211 = vmatpush1.msra.mxu0 %v1165
    %1212 = vmatprep.subr.mxu0 0.0
    %1213 = vmatpush1.msra.mxu0 %v1166
    %1214 = vmatprep.subr.mxu0 0.0
    %1215 = vmatpush1.msra.mxu0 %v1167
    %1216 = vmatprep.subr.mxu0 0.0
    %1217 = vmatpush1.msra.mxu0 %v1168
    %1218 = vmatprep.subr.mxu0 0.0
    %1219 = vmatpush1.msra.mxu0 %v1169
    %1220 = vmatprep.subr.mxu0 0.0
    %1221 = vmatpush1.msra.mxu0 %v1170
    %1222 = vmatprep.subr.mxu0 0.0
    %1223 = vmatpush1.msra.mxu0 %v1171
    %1224 = vmatprep.subr.mxu0 0.0
    %1225 = vmatpush1.msra.mxu0 %v1172
    %1226 = vmatprep.subr.mxu0 0.0
    %1227 = vmatpush1.msra.mxu0 %v1173
    %1228 = vmatprep.subr.mxu0 0.0
    %1229 = vmatpush1.msra.mxu0 0.0
    %1230 = vmatprep.subr.mxu0 0.0
    %1231 = vmatpush1.msra.mxu0 0.0
    %1232 = vmatprep.subr.mxu0 0.0
    %1233 = vmatpush1.msra.mxu0 0.0
    %1234 = vmatprep.subr.mxu0 0.0
    %1235 = vmatpush1.msra.mxu0 0.0
    %1236 = vmatprep.subr.mxu0 0.0
    %1237 = vmatpush1.msra.mxu0 0.0
    %1238 = vmatprep.subr.mxu0 0.0
    %1239 = vmatpush1.msra.mxu0 0.0
    %1240 = vmatprep.subr.mxu0 0.0
    %1241 = vmatpush1.msra.mxu0 0.0
    %1242 = vmatprep.mubr.f32.mxu0 %v1176
    %1243 = vmatmul.mubr.f32.gmra.mrb[0].mxu0 %v1141
    %v1244 = vpop.f32.mrb[0].mxu0
    %v1245 = vadd.f32 0.0, %v1244
    %v1246 = vpop.f32.mrb[0].mxu0
    %1247 = vdwg.mxu0
    %v1249 = vsel %vm1174, %v1148, 0
    %1251 = vmatprep.subr.mxu0 0.0
    %1252 = vmatpush1.msra.mxu0 %v1149
    %1253 = vmatprep.subr.mxu0 0.0
    %1254 = vmatpush1.msra.mxu0 %v1150
    %1255 = vmatprep.subr.mxu0 0.0
    %1256 = vmatpush1.msra.mxu0 %v1151
    %1257 = vmatprep.subr.mxu0 0.0
    %1258 = vmatpush1.msra.mxu0 %v1152
    %1259 = vmatprep.subr.mxu0 0.0
    %1260 = vmatpush1.msra.mxu0 %v1153
    %1261 = vmatprep.subr.mxu0 0.0
    %1262 = vmatpush1.msra.mxu0 %v1154
    %1263 = vmatprep.subr.mxu0 0.0
    %1264 = vmatpush1.msra.mxu0 %v1155
    %1265 = vmatprep.subr.mxu0 0.0
    %1266 = vmatpush1.msra.mxu0 %v1156
    %1267 = vmatprep.subr.mxu0 0.0
    %1268 = vmatpush1.msra.mxu0 %v1157
    %1269 = vmatprep.subr.mxu0 0.0
    %1270 = vmatpush1.msra.mxu0 %v1158
    %1271 = vmatprep.subr.mxu0 0.0
    %1272 = vmatpush1.msra.mxu0 %v1159
    %1273 = vmatprep.subr.mxu0 0.0
    %1274 = vmatpush1.msra.mxu0 %v1160
    %1275 = vmatprep.subr.mxu0 0.0
    %1276 = vmatpush1.msra.mxu0 %v1161
    %1277 = vmatprep.subr.mxu0 0.0
    %1278 = vmatpush1.msra.mxu0 %v1162
    %1279 = vmatprep.subr.mxu0 0.0
    %1280 = vmatpush1.msra.mxu0 %v1163
    %1281 = vmatprep.subr.mxu0 0.0
    %1282 = vmatpush1.msra.mxu0 %v1164
    %1283 = vmatprep.subr.mxu0 0.0
    %1284 = vmatpush1.msra.mxu0 %v1165
    %1285 = vmatprep.subr.mxu0 0.0
    %1286 = vmatpush1.msra.mxu0 %v1166
    %1287 = vmatprep.subr.mxu0 0.0
    %1288 = vmatpush1.msra.mxu0 %v1167
    %1289 = vmatprep.subr.mxu0 0.0
    %1290 = vmatpush1.msra.mxu0 %v1168
    %1291 = vmatprep.subr.mxu0 0.0
    %1292 = vmatpush1.msra.mxu0 %v1169
    %1293 = vmatprep.subr.mxu0 0.0
    %1294 = vmatpush1.msra.mxu0 %v1170
    %1295 = vmatprep.subr.mxu0 0.0
    %1296 = vmatpush1.msra.mxu0 %v1171
    %1297 = vmatprep.subr.mxu0 0.0
    %1298 = vmatpush1.msra.mxu0 %v1172
    %1299 = vmatprep.subr.mxu0 0.0
    %1300 = vmatpush1.msra.mxu0 %v1173
    %1301 = vmatprep.subr.mxu0 0.0
    %1302 = vmatpush1.msra.mxu0 0.0
    %1303 = vmatprep.subr.mxu0 0.0
    %1304 = vmatpush1.msra.mxu0 0.0
    %1305 = vmatprep.subr.mxu0 0.0
    %1306 = vmatpush1.msra.mxu0 0.0
    %1307 = vmatprep.subr.mxu0 0.0
    %1308 = vmatpush1.msra.mxu0 0.0
    %1309 = vmatprep.subr.mxu0 0.0
    %1310 = vmatpush1.msra.mxu0 0.0
    %1311 = vmatprep.subr.mxu0 0.0
    %1312 = vmatpush1.msra.mxu0 0.0
    %1313 = vmatprep.subr.mxu0 0.0
    %1314 = vmatpush1.msra.mxu0 0.0
    %1315 = vmatprep.mubr.f32.mxu0 %v1249
    %1316 = vmatmul.mubr.f32.gmra.mrb[0].mxu0 %v1147
    %v1317 = vpop.f32.mrb[0].mxu0
    %v1318 = vadd.f32 0.0, %v1317
    %v1319 = vpop.f32.mrb[0].mxu0
    %1320 = vdwg.mxu0
    %v1321 = vld [vmem:[%s5] sm:$0x1]
    %v1322 = vand.u32 2147483647, %v1245
    %v1323 = vadd.f32 %v1322, 1e-20
    %v1324 = vand.u32 2147483647, %v1318
    %v1325 = vadd.f32 %v1324, 1e-20
    %v1326 = vadd.f32 %v1323, %v1325
    %v1327 = vrcp.pop %v1326
    %v1328 = vmul.f32 1.0, %v1327
    %v1329 = vmul.f32 %v1323, %v1328
    %v1331 = vlaneseq
    %v1332 = vshrl.u32 %v1331, 7
    %v1333 = vsub.s32 0, %v1332
    %v1334 = vrot.slane %v1321, %v1333
    %v1336 = vmul.f32 %v1329, %v1334
    %v1337 = vadd.f32 %v1245, %v1336
    %v1338 = vmul.f32 %v1325, %v1328
    %v1339 = vmul.f32 %v1338, %v1334
    %v1340 = vadd.f32 %v1318, %v1339
    %v1341 = vadd.f32 %v1337, %v1340
    %v1343 = vrot.slane %v1341, 6
    %vm1345 = vcmp.gt.f32.partialorder %v1341, %v1343
    %v1346 = vsel %vm1345, %v1341, %v1343
    %v1348 = vrot.slane %v1337, 6
    %v1350 = vsel %vm1345, %v1337, %v1348
    %v1352 = vrot.slane %v1340, 6
    %v1354 = vsel %vm1345, %v1340, %v1352
    %v1356 = vrot.slane %v1346, 6
    %vm1358 = vcmp.gt.f32.partialorder %v1341, %v1356
    %v1359 = vsel %vm1358, %v1341, %v1356
    %v1361 = vrot.slane %v1350, 6
    %v1363 = vsel %vm1358, %v1337, %v1361
    %v1365 = vrot.slane %v1354, 6
    %v1367 = vsel %vm1358, %v1340, %v1365
    %v1369 = vrot.slane %v1359, 6
    %vm1371 = vcmp.gt.f32.partialorder %v1341, %v1369
    %v1373 = vrot.slane %v1363, 6
    %v1375 = vsel %vm1371, %v1337, %v1373
    %v1377 = vrot.slane %v1367, 6
    %v1379 = vsel %vm1371, %v1340, %v1377
    %v1380 = vmax.f32 %v1375, 0.0
    %v1381 = vadd.f32 %v1375, %v1379
    %v1382 = vmax.f32 %v1381, 0.0
    %v1383 = vsub.f32 %v1382, %v1380
    %v1384 = vld [vmem:[%s6] sm:$0xff]
    %v1385 = vld [vmem:[%s6 + $0x8] sm:$0xff]
    %v1387 = vrot.slane %v1380, 6
    %vm1388 = vcmask 130048
    %v1389 = vsel %vm1388, %v1387, 0
    %1391 = vmatprep.subr.mxu0 0.0
    %1392 = vmatpush1.msra.mxu0 %v1384
    %1393 = vmatprep.subr.mxu0 0.0
    %1394 = vmatpush1.msra.mxu0 %v1385
    %1395 = vmatprep.subr.mxu0 0.0
    %1396 = vmatpush1.msra.mxu0 0.0
    %1397 = vmatprep.subr.mxu0 0.0
    %1398 = vmatpush1.msra.mxu0 0.0
    %1399 = vmatprep.subr.mxu0 0.0
    %1400 = vmatpush1.msra.mxu0 0.0
    %1401 = vmatprep.subr.mxu0 0.0
    %1402 = vmatpush1.msra.mxu0 0.0
    %1403 = vmatprep.subr.mxu0 0.0
    %1404 = vmatpush1.msra.mxu0 0.0
    %1405 = vmatprep.subr.mxu0 0.0
    %1406 = vmatpush1.msra.mxu0 0.0
    %1407 = vmatprep.subr.mxu0 0.0
    %1408 = vmatpush1.msra.mxu0 0.0
    %1409 = vmatprep.subr.mxu0 0.0
    %1410 = vmatpush1.msra.mxu0 0.0
    %1411 = vmatprep.subr.mxu0 0.0
    %1412 = vmatpush1.msra.mxu0 0.0
    %1413 = vmatprep.subr.mxu0 0.0
    %1414 = vmatpush1.msra.mxu0 0.0
    %1415 = vmatprep.subr.mxu0 0.0
    %1416 = vmatpush1.msra.mxu0 0.0
    %1417 = vmatprep.subr.mxu0 0.0
    %1418 = vmatpush1.msra.mxu0 0.0
    %1419 = vmatprep.subr.mxu0 0.0
    %1420 = vmatpush1.msra.mxu0 0.0
    %1421 = vmatprep.subr.mxu0 0.0
    %1422 = vmatpush1.msra.mxu0 0.0
    %1423 = vmatprep.subr.mxu0 0.0
    %1424 = vmatpush1.msra.mxu0 0.0
    %1425 = vmatprep.subr.mxu0 0.0
    %1426 = vmatpush1.msra.mxu0 0.0
    %1427 = vmatprep.subr.mxu0 0.0
    %1428 = vmatpush1.msra.mxu0 0.0
    %1429 = vmatprep.subr.mxu0 0.0
    %1430 = vmatpush1.msra.mxu0 0.0
    %1431 = vmatprep.subr.mxu0 0.0
    %1432 = vmatpush1.msra.mxu0 0.0
    %1433 = vmatprep.subr.mxu0 0.0
    %1434 = vmatpush1.msra.mxu0 0.0
    %1435 = vmatprep.subr.mxu0 0.0
    %1436 = vmatpush1.msra.mxu0 0.0
    %1437 = vmatprep.subr.mxu0 0.0
    %1438 = vmatpush1.msra.mxu0 0.0
    %1439 = vmatprep.subr.mxu0 0.0
    %1440 = vmatpush1.msra.mxu0 0.0
    %1441 = vmatprep.subr.mxu0 0.0
    %1442 = vmatpush1.msra.mxu0 0.0
    %1443 = vmatprep.subr.mxu0 0.0
    %1444 = vmatpush1.msra.mxu0 0.0
    %1445 = vmatprep.subr.mxu0 0.0
    %1446 = vmatpush1.msra.mxu0 0.0
    %1447 = vmatprep.subr.mxu0 0.0
    %1448 = vmatpush1.msra.mxu0 0.0
    %1449 = vmatprep.subr.mxu0 0.0
    %1450 = vmatpush1.msra.mxu0 0.0
    %1451 = vmatprep.subr.mxu0 0.0
    %1452 = vmatpush1.msra.mxu0 0.0
    %1453 = vmatprep.subr.mxu0 0.0
    %1454 = vmatpush1.msra.mxu0 0.0
    %1455 = vmatprep.mubr.f32.mxu0 0.0
    %1456 = vmatmul.mubr.f32.gmra.mrb[0].mxu0 %v1389
    %v1457 = vpop.f32.mrb[0].mxu0
    %v1458 = vadd.f32 0.0, %v1457
    %v1459 = vpop.f32.mrb[0].mxu0
    %1460 = vdwg.mxu0
    %v1462 = vrot.slane %v1383, 6
    %v1463 = vsel %vm1388, %v1462, 0
    %1465 = vmatprep.subr.mxu0 0.0
    %1466 = vmatpush1.msra.mxu0 %v1384
    %1467 = vmatprep.subr.mxu0 0.0
    %1468 = vmatpush1.msra.mxu0 %v1385
    %1469 = vmatprep.subr.mxu0 0.0
    %1470 = vmatpush1.msra.mxu0 0.0
    %1471 = vmatprep.subr.mxu0 0.0
    %1472 = vmatpush1.msra.mxu0 0.0
    %1473 = vmatprep.subr.mxu0 0.0
    %1474 = vmatpush1.msra.mxu0 0.0
    %1475 = vmatprep.subr.mxu0 0.0
    %1476 = vmatpush1.msra.mxu0 0.0
    %1477 = vmatprep.subr.mxu0 0.0
    %1478 = vmatpush1.msra.mxu0 0.0
    %1479 = vmatprep.subr.mxu0 0.0
    %1480 = vmatpush1.msra.mxu0 0.0
    %1481 = vmatprep.subr.mxu0 0.0
    %1482 = vmatpush1.msra.mxu0 0.0
    %1483 = vmatprep.subr.mxu0 0.0
    %1484 = vmatpush1.msra.mxu0 0.0
    %1485 = vmatprep.subr.mxu0 0.0
    %1486 = vmatpush1.msra.mxu0 0.0
    %1487 = vmatprep.subr.mxu0 0.0
    %1488 = vmatpush1.msra.mxu0 0.0
    %1489 = vmatprep.subr.mxu0 0.0
    %1490 = vmatpush1.msra.mxu0 0.0
    %1491 = vmatprep.subr.mxu0 0.0
    %1492 = vmatpush1.msra.mxu0 0.0
    %1493 = vmatprep.subr.mxu0 0.0
    %1494 = vmatpush1.msra.mxu0 0.0
    %1495 = vmatprep.subr.mxu0 0.0
    %1496 = vmatpush1.msra.mxu0 0.0
    %1497 = vmatprep.subr.mxu0 0.0
    %1498 = vmatpush1.msra.mxu0 0.0
    %1499 = vmatprep.subr.mxu0 0.0
    %1500 = vmatpush1.msra.mxu0 0.0
    %1501 = vmatprep.subr.mxu0 0.0
    %1502 = vmatpush1.msra.mxu0 0.0
    %1503 = vmatprep.subr.mxu0 0.0
    %1504 = vmatpush1.msra.mxu0 0.0
    %1505 = vmatprep.subr.mxu0 0.0
    %1506 = vmatpush1.msra.mxu0 0.0
    %1507 = vmatprep.subr.mxu0 0.0
    %1508 = vmatpush1.msra.mxu0 0.0
    %1509 = vmatprep.subr.mxu0 0.0
    %1510 = vmatpush1.msra.mxu0 0.0
    %1511 = vmatprep.subr.mxu0 0.0
    %1512 = vmatpush1.msra.mxu0 0.0
    %1513 = vmatprep.subr.mxu0 0.0
    %1514 = vmatpush1.msra.mxu0 0.0
    %1515 = vmatprep.subr.mxu0 0.0
    %1516 = vmatpush1.msra.mxu0 0.0
    %1517 = vmatprep.subr.mxu0 0.0
    %1518 = vmatpush1.msra.mxu0 0.0
    %1519 = vmatprep.subr.mxu0 0.0
    %1520 = vmatpush1.msra.mxu0 0.0
    %1521 = vmatprep.subr.mxu0 0.0
    %1522 = vmatpush1.msra.mxu0 0.0
    %1523 = vmatprep.subr.mxu0 0.0
    %1524 = vmatpush1.msra.mxu0 0.0
    %1525 = vmatprep.subr.mxu0 0.0
    %1526 = vmatpush1.msra.mxu0 0.0
    %1527 = vmatprep.subr.mxu0 0.0
    %1528 = vmatpush1.msra.mxu0 0.0
    %1529 = vmatprep.mubr.f32.mxu0 0.0
    %1530 = vmatmul.mubr.f32.gmra.mrb[0].mxu0 %v1463
    %v1531 = vpop.f32.mrb[0].mxu0
    %v1532 = vadd.f32 0.0, %v1531
    %v1533 = vpop.f32.mrb[0].mxu0
    %1534 = vdwg.mxu0
    %v1535 = vld [vmem:[%s7] sm:$0x1]
    %v1536 = vand.u32 2147483647, %v1458
    %v1537 = vadd.f32 %v1536, 1e-20
    %v1538 = vand.u32 2147483647, %v1532
    %v1539 = vadd.f32 %v1538, 1e-20
    %v1540 = vadd.f32 %v1537, %v1539
    %v1541 = vrcp.pop %v1540
    %v1542 = vmul.f32 1.0, %v1541
    %v1543 = vmul.f32 %v1537, %v1542
    %v1545 = vlaneseq
    %v1546 = vshrl.u32 %v1545, 7
    %v1547 = vsub.s32 0, %v1546
    %v1548 = vrot.slane %v1535, %v1547
    %v1550 = vmul.f32 %v1543, %v1548
    %v1551 = vadd.f32 %v1458, %v1550
    %v1552 = vmul.f32 %v1539, %v1542
    %v1553 = vmul.f32 %v1552, %v1548
    %v1554 = vadd.f32 %v1532, %v1553
    %v1555 = vmax.f32 %v1551, 0.0
    %v1556 = vadd.f32 %v1551, %v1554
    %v1557 = vmax.f32 %v1556, 0.0
    %v1558 = vsub.f32 %v1557, %v1555
    %v1559 = vld [vmem:[%s8] sm:$0xff]
    %v1560 = vld [vmem:[%s8 + $0x8] sm:$0xff]
    %v1561 = vld [vmem:[%s8 + $0x10] sm:$0xff]
    %v1562 = vld [vmem:[%s8 + $0x18] sm:$0xff]
    %vm1563 = vcmask 261120
    %v1565 = vsel %vm1563, %v1555, 0
    %1567 = vmatprep.subr.mxu0 0.0
    %1568 = vmatpush1.msra.mxu0 %v1559
    %1569 = vmatprep.subr.mxu0 0.0
    %1570 = vmatpush1.msra.mxu0 %v1560
    %1571 = vmatprep.subr.mxu0 0.0
    %1572 = vmatpush1.msra.mxu0 %v1561
    %1573 = vmatprep.subr.mxu0 0.0
    %1574 = vmatpush1.msra.mxu0 %v1562
    %1575 = vmatprep.subr.mxu0 0.0
    %1576 = vmatpush1.msra.mxu0 0.0
    %1577 = vmatprep.subr.mxu0 0.0
    %1578 = vmatpush1.msra.mxu0 0.0
    %1579 = vmatprep.subr.mxu0 0.0
    %1580 = vmatpush1.msra.mxu0 0.0
    %1581 = vmatprep.subr.mxu0 0.0
    %1582 = vmatpush1.msra.mxu0 0.0
    %1583 = vmatprep.subr.mxu0 0.0
    %1584 = vmatpush1.msra.mxu0 0.0
    %1585 = vmatprep.subr.mxu0 0.0
    %1586 = vmatpush1.msra.mxu0 0.0
    %1587 = vmatprep.subr.mxu0 0.0
    %1588 = vmatpush1.msra.mxu0 0.0
    %1589 = vmatprep.subr.mxu0 0.0
    %1590 = vmatpush1.msra.mxu0 0.0
    %1591 = vmatprep.subr.mxu0 0.0
    %1592 = vmatpush1.msra.mxu0 0.0
    %1593 = vmatprep.subr.mxu0 0.0
    %1594 = vmatpush1.msra.mxu0 0.0
    %1595 = vmatprep.subr.mxu0 0.0
    %1596 = vmatpush1.msra.mxu0 0.0
    %1597 = vmatprep.subr.mxu0 0.0
    %1598 = vmatpush1.msra.mxu0 0.0
    %1599 = vmatprep.subr.mxu0 0.0
    %1600 = vmatpush1.msra.mxu0 0.0
    %1601 = vmatprep.subr.mxu0 0.0
    %1602 = vmatpush1.msra.mxu0 0.0
    %1603 = vmatprep.subr.mxu0 0.0
    %1604 = vmatpush1.msra.mxu0 0.0
    %1605 = vmatprep.subr.mxu0 0.0
    %1606 = vmatpush1.msra.mxu0 0.0
    %1607 = vmatprep.subr.mxu0 0.0
    %1608 = vmatpush1.msra.mxu0 0.0
    %1609 = vmatprep.subr.mxu0 0.0
    %1610 = vmatpush1.msra.mxu0 0.0
    %1611 = vmatprep.subr.mxu0 0.0
    %1612 = vmatpush1.msra.mxu0 0.0
    %1613 = vmatprep.subr.mxu0 0.0
    %1614 = vmatpush1.msra.mxu0 0.0
    %1615 = vmatprep.subr.mxu0 0.0
    %1616 = vmatpush1.msra.mxu0 0.0
    %1617 = vmatprep.subr.mxu0 0.0
    %1618 = vmatpush1.msra.mxu0 0.0
    %1619 = vmatprep.subr.mxu0 0.0
    %1620 = vmatpush1.msra.mxu0 0.0
    %1621 = vmatprep.subr.mxu0 0.0
    %1622 = vmatpush1.msra.mxu0 0.0
    %1623 = vmatprep.subr.mxu0 0.0
    %1624 = vmatpush1.msra.mxu0 0.0
    %1625 = vmatprep.subr.mxu0 0.0
    %1626 = vmatpush1.msra.mxu0 0.0
    %1627 = vmatprep.subr.mxu0 0.0
    %1628 = vmatpush1.msra.mxu0 0.0
    %1629 = vmatprep.subr.mxu0 0.0
    %1630 = vmatpush1.msra.mxu0 0.0
    %1631 = vmatprep.mubr.f32.mxu0 0.0
    %1632 = vmatmul.mubr.f32.gmra.mrb[0].mxu0 %v1565
    %v1633 = vpop.f32.mrb[0].mxu0
    %v1634 = vadd.f32 0.0, %v1633
    %v1635 = vpop.f32.mrb[0].mxu0
    %1636 = vdwg.mxu0
    %v1638 = vsel %vm1563, %v1558, 0
    %1640 = vmatprep.subr.mxu0 0.0
    %1641 = vmatpush1.msra.mxu0 %v1559
    %1642 = vmatprep.subr.mxu0 0.0
    %1643 = vmatpush1.msra.mxu0 %v1560
    %1644 = vmatprep.subr.mxu0 0.0
    %1645 = vmatpush1.msra.mxu0 %v1561
    %1646 = vmatprep.subr.mxu0 0.0
    %1647 = vmatpush1.msra.mxu0 %v1562
    %1648 = vmatprep.subr.mxu0 0.0
    %1649 = vmatpush1.msra.mxu0 0.0
    %1650 = vmatprep.subr.mxu0 0.0
    %1651 = vmatpush1.msra.mxu0 0.0
    %1652 = vmatprep.subr.mxu0 0.0
    %1653 = vmatpush1.msra.mxu0 0.0
    %1654 = vmatprep.subr.mxu0 0.0
    %1655 = vmatpush1.msra.mxu0 0.0
    %1656 = vmatprep.subr.mxu0 0.0
    %1657 = vmatpush1.msra.mxu0 0.0
    %1658 = vmatprep.subr.mxu0 0.0
    %1659 = vmatpush1.msra.mxu0 0.0
    %1660 = vmatprep.subr.mxu0 0.0
    %1661 = vmatpush1.msra.mxu0 0.0
    %1662 = vmatprep.subr.mxu0 0.0
    %1663 = vmatpush1.msra.mxu0 0.0
    %1664 = vmatprep.subr.mxu0 0.0
    %1665 = vmatpush1.msra.mxu0 0.0
    %1666 = vmatprep.subr.mxu0 0.0
    %1667 = vmatpush1.msra.mxu0 0.0
    %1668 = vmatprep.subr.mxu0 0.0
    %1669 = vmatpush1.msra.mxu0 0.0
    %1670 = vmatprep.subr.mxu0 0.0
    %1671 = vmatpush1.msra.mxu0 0.0
    %1672 = vmatprep.subr.mxu0 0.0
    %1673 = vmatpush1.msra.mxu0 0.0
    %1674 = vmatprep.subr.mxu0 0.0
    %1675 = vmatpush1.msra.mxu0 0.0
    %1676 = vmatprep.subr.mxu0 0.0
    %1677 = vmatpush1.msra.mxu0 0.0
    %1678 = vmatprep.subr.mxu0 0.0
    %1679 = vmatpush1.msra.mxu0 0.0
    %1680 = vmatprep.subr.mxu0 0.0
    %1681 = vmatpush1.msra.mxu0 0.0
    %1682 = vmatprep.subr.mxu0 0.0
    %1683 = vmatpush1.msra.mxu0 0.0
    %1684 = vmatprep.subr.mxu0 0.0
    %1685 = vmatpush1.msra.mxu0 0.0
    %1686 = vmatprep.subr.mxu0 0.0
    %1687 = vmatpush1.msra.mxu0 0.0
    %1688 = vmatprep.subr.mxu0 0.0
    %1689 = vmatpush1.msra.mxu0 0.0
    %1690 = vmatprep.subr.mxu0 0.0
    %1691 = vmatpush1.msra.mxu0 0.0
    %1692 = vmatprep.subr.mxu0 0.0
    %1693 = vmatpush1.msra.mxu0 0.0
    %1694 = vmatprep.subr.mxu0 0.0
    %1695 = vmatpush1.msra.mxu0 0.0
    %1696 = vmatprep.subr.mxu0 0.0
    %1697 = vmatpush1.msra.mxu0 0.0
    %1698 = vmatprep.subr.mxu0 0.0
    %1699 = vmatpush1.msra.mxu0 0.0
    %1700 = vmatprep.subr.mxu0 0.0
    %1701 = vmatpush1.msra.mxu0 0.0
    %1702 = vmatprep.subr.mxu0 0.0
    %1703 = vmatpush1.msra.mxu0 0.0
    %1704 = vmatprep.mubr.f32.mxu0 0.0
    %1705 = vmatmul.mubr.f32.gmra.mrb[0].mxu0 %v1638
    %v1706 = vpop.f32.mrb[0].mxu0
    %v1707 = vadd.f32 0.0, %v1706
    %v1708 = vpop.f32.mrb[0].mxu0
    %1709 = vdwg.mxu0
    %v1710 = vld [vmem:[%s9] sm:$0x1]
    %v1711 = vand.u32 2147483647, %v1634
    %v1712 = vadd.f32 %v1711, 1e-20
    %v1713 = vand.u32 2147483647, %v1707
    %v1714 = vadd.f32 %v1713, 1e-20
    %v1715 = vadd.f32 %v1712, %v1714
    %v1716 = vrcp.pop %v1715
    %v1717 = vmul.f32 1.0, %v1716
    %v1718 = vmul.f32 %v1712, %v1717
    %v1720 = vlaneseq
    %v1721 = vshrl.u32 %v1720, 7
    %v1722 = vsub.s32 0, %v1721
    %v1723 = vrot.slane %v1710, %v1722
    %v1725 = vmul.f32 %v1718, %v1723
    %v1726 = vadd.f32 %v1634, %v1725
    %v1727 = vmul.f32 %v1714, %v1717
    %v1728 = vmul.f32 %v1727, %v1723
    %v1729 = vadd.f32 %v1707, %v1728
    %v1730 = vsub.f32 %v1726, %v1729
    %v1731 = vmul.f32 %v1730, 0.5
    %v1732 = vtanh.pop %v1731
    %v1733 = vadd.f32 %v1732, 1.0
    %v1734 = vmul.f32 %v1733, 0.5
    %vm1735 = vcmask 74752
    %v1736 = vsel %vm1735, %v1734, 0.0
    %1737 = vadd.xlane.f32.xlu0 %v1736
    %v1738 = vpop.xlane.xlu0 %1737
    %v1739 = vrot.slane %v1738, 4
    %v1740 = vadd.f32 %v1738, %v1739
    %v1741 = vrot.slane %v1740, 2
    %v1742 = vadd.f32 %v1740, %v1741
    %v1743 = vrot.slane %v1742, 1
    %v1744 = vadd.f32 %v1742, %v1743
    %s1745 = vtos %v1744
    %v1746 = vstv %s1745
    %vm1747 = vcmask 0
    %1748 = vst.msk [vmem:[#allocation2] sm:$0x1] %vm1747, %v1746
    // Predicated region
    $region42: #{_lambda_.1} parent=1 // pred_check
      _
    $region43: #{_lambda_.1} parent=1 // pred_check_branch
      %1750 = sbr.rel (0) target = $region45
    $region44: #{_lambda_.1} parent=1 // pred_region
      %s1752 = ssub.s32 16, 16
      %1753 = vsyncadd [#allocation3], %s1752
      %s1755 = sshll.u32 [#allocation2], 4
      %s1756 = int_to_ptr.vmem [resolvable:$true] %s1755
      %1758 = dma.vmem_to_hbm [thread:$0]  %s1756, 16, %s10, [#allocation3]
    $region45: #{_lambda_.1} parent=1 // pred_fallthru
      _
    // Predicated region
    $region46: #{_lambda_.1} parent=1 // pred_check
      _
    $region47: #{_lambda_.1} parent=1 // pred_check_branch
      %1760 = sbr.rel (0) target = $region49
    $region48: #{_lambda_.1} parent=1 // pred_region
      %1761 = dma.done [#allocation3], 16
    $region49: #{_lambda_.1} parent=1 // pred_fallthru
      _
    %1762 = vsyncpa [#allocation3], 1

</llo_original>
